<compile_context>
chip_gen: v6e
topology: v6e:2x2x1
jax: 0.10.0
libtpu: 0.0.40
codegen_flags: <defaults>
</compile_context>

<pallas_src>
import jax
import jax.numpy as jnp
from jax.experimental import pallas as pl
from jax.experimental.pallas import tpu as pltpu


def embed_kernel(x_ref, w1f_ref, b1_ref, w2_ref, o_ref):
    # x_ref  : (C, J, T)    f32   one batch element, NCHW slab (untouched layout)
    # w1f_ref: (C, J, mid)  f32   BN-folded first conv weights (per joint)
    # b1_ref : (J, mid)     f32   BN-folded first conv bias    (per joint)
    # w2_ref : (mid, out)   bf16  second conv weights
    # o_ref  : (out, J*T)   f32   channel-first output slab
    C, J, T = x_ref.shape
    mid = w2_ref.shape[0]

    # Layer 1: BN + 1x1 conv (K=3) as 3 broadcast FMAs on the VPU.
    h = b1_ref[...][:, None, :]                                # (J, 1, mid)
    for c in range(C):                                         # C == 3, static unroll
        h = h + x_ref[c][:, :, None] * w1f_ref[c][:, None, :]  # (J, T, mid)
    h = jnp.maximum(h, 0.0)

    # Layer 2: (J*T, mid) @ (mid, out) on the MXU, bf16 operands, f32 accumulate.
    hr = h.reshape(J * T, mid).astype(jnp.bfloat16)
    y = jnp.dot(hr, w2_ref[...], preferred_element_type=jnp.float32)
    y = jnp.maximum(y, 0.0)                                    # (J*T, out)

    # Store transposed so the HBM result is already NCHW after a free reshape.
    o_ref[...] = y.T.astype(o_ref.dtype)


def embed_forward(x, gamma, beta, w1, w2, eps=1e-5):
    """x: (bs, C, J, T) NCHW float32. Returns (bs, dim_out, J, T) float32."""
    bs, C, J, T = x.shape
    dim_mid, dim_out = w1.shape[1], w2.shape[1]

    # --- BatchNorm1d(C*J), training mode: biased batch statistics ---
    xf = x.reshape(bs, C * J, T)
    mean = jnp.mean(xf, axis=(0, 2))                 # (C*J,)
    var = jnp.var(xf, axis=(0, 2))                   # biased, as BN uses
    scale_c = gamma * jax.lax.rsqrt(var + eps)       # (C*J,)
    shift_c = beta - mean * scale_c                  # (C*J,)
    scale = scale_c.reshape(C, J)                    # (C, J)
    shift = shift_c.reshape(C, J)                    # (C, J)

    # --- fold BN affine into the first 1x1 conv (tiny per-joint tables) ---
    w1f = scale[:, :, None] * w1[:, None, :]         # (C, J, dim_mid)
    b1 = shift.T @ w1                                # (J, dim_mid)
    w2b = w2.astype(jnp.bfloat16)                    # bf16 MXU operand

    out = pl.pallas_call(
        embed_kernel,
        out_shape=jax.ShapeDtypeStruct((bs, dim_out, J * T), jnp.float32),
        grid_spec=pltpu.PrefetchScalarGridSpec(
            num_scalar_prefetch=0,
            grid=(bs,),
            in_specs=[
                pl.BlockSpec((None, C, J, T), lambda b: (b, 0, 0, 0)),
                pl.BlockSpec((C, J, dim_mid), lambda b: (0, 0, 0)),
                pl.BlockSpec((J, dim_mid), lambda b: (0, 0)),
                pl.BlockSpec((dim_mid, dim_out), lambda b: (0, 0)),
            ],
            out_specs=pl.BlockSpec((None, dim_out, J * T), lambda b: (b, 0, 0)),
        ),
        compiler_params=pltpu.CompilerParams(
            dimension_semantics=("parallel",)),
    )(x, w1f, b1, w2b)

    # Free metadata reshape: (bs, out, J*T) -> (bs, out, J, T)  == NCHW.
    return out.reshape(bs, dim_out, J, T)


def ref_forward(x, gamma, beta, w1, w2, eps=1e-5):
    """Pure-JAX f32 reference mirroring the PyTorch forward."""
    bs, C, J, T = x.shape
    xf = x.reshape(bs, C * J, T)
    mean = xf.mean(axis=(0, 2), keepdims=True)
    var = xf.var(axis=(0, 2), keepdims=True)
    xn = (xf - mean) / jnp.sqrt(var + eps) * gamma[None, :, None] + beta[None, :, None]
    xn = xn.reshape(bs, C, J, T)
    h = jnp.maximum(jnp.einsum("bcjt,co->bojt", xn, w1), 0.0)
    return jnp.maximum(jnp.einsum("bcjt,co->bojt", h, w2), 0.0)


if __name__ == "__main__":
    bs, C, J, T = 2, 3, 25, 8        # norm_data hard-codes 25 joints
    dim_mid, dim1 = 64, 128

    key = jax.random.PRNGKey(0)
    kx, kg, kb, k1, k2 = jax.random.split(key, 5)

    x = jax.random.normal(kx, (bs, C, J, T), dtype=jnp.float32)

    # BatchNorm affine params (PyTorch defaults are weight=1, bias=0; perturb
    # slightly so the BN-folding path is actually exercised).
    gamma = 1.0 + 0.1 * jax.random.normal(kg, (C * J,), dtype=jnp.float32)
    beta = 0.1 * jax.random.normal(kb, (C * J,), dtype=jnp.float32)

    # Conv2d(k=1, bias=False) weights stored directly as (in, out) matrices.
    bound1 = 1.0 / jnp.sqrt(jnp.float32(C))
    w1 = jax.random.uniform(k1, (C, dim_mid), jnp.float32, -bound1, bound1)
    bound2 = 1.0 / jnp.sqrt(jnp.float32(dim_mid))
    w2 = jax.random.uniform(k2, (dim_mid, dim1), jnp.float32, -bound2, bound2)

    fwd = jax.jit(embed_forward)
    y = jax.block_until_ready(fwd(x, gamma, beta, w1, w2))

    y_ref = ref_forward(x, gamma, beta, w1, w2)
    assert y.shape == (bs, dim1, J, T)
    # bf16 operands on the second matmul -> relaxed tolerance vs f32 reference.
    assert jnp.allclose(y, y_ref, atol=3e-2, rtol=3e-2), float(
        jnp.max(jnp.abs(y - y_ref)))

    print("KERNEL_OK")
</pallas_src>

<mosaic_0001>
module attributes {stable_mosaic.version = 11 : i64} {
  func.func @embed_kernel(%arg0: i32, %arg1: memref<1x3x25x8xf32, #tpu.memory_space<vmem>>, %arg2: memref<3x25x64xf32, #tpu.memory_space<vmem>>, %arg3: memref<25x64xf32, #tpu.memory_space<vmem>>, %arg4: memref<64x128xbf16, #tpu.memory_space<vmem>>, %arg5: memref<1x128x200xf32, #tpu.memory_space<vmem>>) attributes {dimension_semantics = [#tpu.dimension_semantics<parallel>], iteration_bounds = array<i64: 2>, scalar_prefetch = 0 : i64, scratch_operands = 0 : i64, tpu.core_type = #tpu.core_type<tc>, window_params = [{transform_indices = @transform_0, window_bounds = array<i64: 1, 3, 25, 8>}, {pipeline_mode = #tpu.pipeline_mode<synchronous>, transform_indices = @transform_1, window_bounds = array<i64: 3, 25, 64>}, {pipeline_mode = #tpu.pipeline_mode<synchronous>, transform_indices = @transform_2, window_bounds = array<i64: 25, 64>}, {pipeline_mode = #tpu.pipeline_mode<synchronous>, transform_indices = @transform_3, window_bounds = array<i64: 64, 128>}, {transform_indices = @transform_4, window_bounds = array<i64: 1, 128, 200>}]} {
    %c0 = arith.constant 0 : index
    %c0_0 = arith.constant 0 : index
    %0 = vector.load %arg3[%c0, %c0_0] : memref<25x64xf32, #tpu.memory_space<vmem>>, vector<25x64xf32>
    %1 = vector.shape_cast %0 : vector<25x64xf32> to vector<25x1x64xf32>
    %c0_1 = arith.constant 0 : index
    %c0_2 = arith.constant 0 : index
    %c0_3 = arith.constant 0 : index
    %c0_4 = arith.constant 0 : index
    %2 = vector.load %arg1[%c0_1, %c0_2, %c0_3, %c0_4] : memref<1x3x25x8xf32, #tpu.memory_space<vmem>>, vector<1x1x25x8xf32>
    %3 = vector.shape_cast %2 : vector<1x1x25x8xf32> to vector<25x8xf32>
    %4 = vector.shape_cast %3 : vector<25x8xf32> to vector<25x8x1xf32>
    %c0_5 = arith.constant 0 : index
    %c0_6 = arith.constant 0 : index
    %c0_7 = arith.constant 0 : index
    %5 = vector.load %arg2[%c0_5, %c0_6, %c0_7] : memref<3x25x64xf32, #tpu.memory_space<vmem>>, vector<1x25x64xf32>
    %6 = vector.shape_cast %5 : vector<1x25x64xf32> to vector<25x64xf32>
    %7 = vector.shape_cast %6 : vector<25x64xf32> to vector<25x1x64xf32>
    %8 = vector.broadcast %4 : vector<25x8x1xf32> to vector<25x8x64xf32>
    %9 = vector.broadcast %7 : vector<25x1x64xf32> to vector<25x8x64xf32>
    %10 = arith.mulf %8, %9 : vector<25x8x64xf32>
    %11 = vector.broadcast %1 : vector<25x1x64xf32> to vector<25x8x64xf32>
    %12 = arith.addf %11, %10 : vector<25x8x64xf32>
    %c0_8 = arith.constant 0 : index
    %c1 = arith.constant 1 : index
    %c0_9 = arith.constant 0 : index
    %c0_10 = arith.constant 0 : index
    %13 = vector.load %arg1[%c0_8, %c1, %c0_9, %c0_10] : memref<1x3x25x8xf32, #tpu.memory_space<vmem>>, vector<1x1x25x8xf32>
    %14 = vector.shape_cast %13 : vector<1x1x25x8xf32> to vector<25x8xf32>
    %15 = vector.shape_cast %14 : vector<25x8xf32> to vector<25x8x1xf32>
    %c1_11 = arith.constant 1 : index
    %c0_12 = arith.constant 0 : index
    %c0_13 = arith.constant 0 : index
    %16 = vector.load %arg2[%c1_11, %c0_12, %c0_13] : memref<3x25x64xf32, #tpu.memory_space<vmem>>, vector<1x25x64xf32>
    %17 = vector.shape_cast %16 : vector<1x25x64xf32> to vector<25x64xf32>
    %18 = vector.shape_cast %17 : vector<25x64xf32> to vector<25x1x64xf32>
    %19 = vector.broadcast %15 : vector<25x8x1xf32> to vector<25x8x64xf32>
    %20 = vector.broadcast %18 : vector<25x1x64xf32> to vector<25x8x64xf32>
    %21 = arith.mulf %19, %20 : vector<25x8x64xf32>
    %22 = arith.addf %12, %21 : vector<25x8x64xf32>
    %c0_14 = arith.constant 0 : index
    %c2 = arith.constant 2 : index
    %c0_15 = arith.constant 0 : index
    %c0_16 = arith.constant 0 : index
    %23 = vector.load %arg1[%c0_14, %c2, %c0_15, %c0_16] : memref<1x3x25x8xf32, #tpu.memory_space<vmem>>, vector<1x1x25x8xf32>
    %24 = vector.shape_cast %23 : vector<1x1x25x8xf32> to vector<25x8xf32>
    %25 = vector.shape_cast %24 : vector<25x8xf32> to vector<25x8x1xf32>
    %c2_17 = arith.constant 2 : index
    %c0_18 = arith.constant 0 : index
    %c0_19 = arith.constant 0 : index
    %26 = vector.load %arg2[%c2_17, %c0_18, %c0_19] : memref<3x25x64xf32, #tpu.memory_space<vmem>>, vector<1x25x64xf32>
    %27 = vector.shape_cast %26 : vector<1x25x64xf32> to vector<25x64xf32>
    %28 = vector.shape_cast %27 : vector<25x64xf32> to vector<25x1x64xf32>
    %29 = vector.broadcast %25 : vector<25x8x1xf32> to vector<25x8x64xf32>
    %30 = vector.broadcast %28 : vector<25x1x64xf32> to vector<25x8x64xf32>
    %31 = arith.mulf %29, %30 : vector<25x8x64xf32>
    %32 = arith.addf %22, %31 : vector<25x8x64xf32>
    %cst = arith.constant 0.000000e+00 : f32
    %33 = vector.broadcast %cst : f32 to vector<25x8x64xf32>
    %34 = arith.maximumf %32, %33 : vector<25x8x64xf32>
    %35 = vector.shape_cast %34 : vector<25x8x64xf32> to vector<200x64xf32>
    %36 = arith.truncf %35 : vector<200x64xf32> to vector<200x64xbf16>
    %c0_20 = arith.constant 0 : index
    %c0_21 = arith.constant 0 : index
    %37 = vector.load %arg4[%c0_20, %c0_21] : memref<64x128xbf16, #tpu.memory_space<vmem>>, vector<64x128xbf16>
    %cst_22 = arith.constant dense<0.000000e+00> : vector<200x128xf32>
    %38 = tpu.matmul %36, %37, %cst_22 {dimension_numbers = #tpu.dot_dimension_numbers<[1], [0], [0], [1], [0, 0, 1, 1], [], []>} : vector<200x64xbf16>, vector<64x128xbf16>, vector<200x128xf32> -> vector<200x128xf32>
    %cst_23 = arith.constant 0.000000e+00 : f32
    %39 = vector.broadcast %cst_23 : f32 to vector<200x128xf32>
    %40 = arith.maximumf %38, %39 : vector<200x128xf32>
    %41 = tpu.transpose %40, [1, 0] : vector<200x128xf32> -> vector<128x200xf32>
    %c0_24 = arith.constant 0 : index
    %c0_25 = arith.constant 0 : index
    %c0_26 = arith.constant 0 : index
    %42 = vector.load %arg5[%c0_24, %c0_25, %c0_26] : memref<1x128x200xf32, #tpu.memory_space<vmem>>, vector<1x128x200xf32>
    %43 = vector.shape_cast %42 : vector<1x128x200xf32> to vector<128x200xf32>
    %44 = vector.shape_cast %41 : vector<128x200xf32> to vector<1x128x200xf32>
    tpu.vector_store %arg5[%c0_24, %c0_25, %c0_26], %44 {strides = array<i32>} : memref<1x128x200xf32, #tpu.memory_space<vmem>>, vector<1x128x200xf32>,
    return
  }
  func.func @transform_0(%arg0: i32) -> (i32, i32, i32, i32) {
    %c0_i32 = arith.constant 0 : i32
    %c0_i32_0 = arith.constant 0 : i32
    %c0_i32_1 = arith.constant 0 : i32
    %c0_i32_2 = arith.constant 0 : i32
    return %arg0, %c0_i32, %c0_i32_0, %c0_i32_1 : i32, i32, i32, i32
  }
  func.func @transform_1(%arg0: i32) -> (i32, i32, i32) {
    %c0_i32 = arith.constant 0 : i32
    %c0_i32_0 = arith.constant 0 : i32
    %c0_i32_1 = arith.constant 0 : i32
    %c0_i32_2 = arith.constant 0 : i32
    return %c0_i32, %c0_i32_0, %c0_i32_1 : i32, i32, i32
  }
  func.func @transform_2(%arg0: i32) -> (i32, i32) {
    %c0_i32 = arith.constant 0 : i32
    %c0_i32_0 = arith.constant 0 : i32
    %c0_i32_1 = arith.constant 0 : i32
    return %c0_i32, %c0_i32_0 : i32, i32
  }
  func.func @transform_3(%arg0: i32) -> (i32, i32) {
    %c0_i32 = arith.constant 0 : i32
    %c0_i32_0 = arith.constant 0 : i32
    %c0_i32_1 = arith.constant 0 : i32
    return %c0_i32, %c0_i32_0 : i32, i32
  }
  func.func @transform_4(%arg0: i32) -> (i32, i32, i32) {
    %c0_i32 = arith.constant 0 : i32
    %c0_i32_0 = arith.constant 0 : i32
    %c0_i32_1 = arith.constant 0 : i32
    return %arg0, %c0_i32, %c0_i32_0 : i32, i32, i32
  }
}

</mosaic_0001>

<llo_original>
// kernel: mul.12
$region0: #{mul.12}
  %s0 = inlined_call_operand.vmem [shape: f32[75], index: 0, kind: input, shape index: {}]
  %s1 = inlined_call_operand.vmem [shape: f32[3,25], index: 1, kind: output, shape index: {}]
  $region1: #{mul.12} parent=0
    #allocation0 [shape = 'u8[4096]{0}', space=vmem, size = 0x1000, scoped, tag = 'scoped mem for output reshape']
    #allocation1 [shape = 'u8[4096]{0}', space=vmem, size = 0x1000, scoped, tag = 'scoped mem for input reshape']
    %s3 = sshll.u32 1, 1
    %s4 = ssub.s32 %s3, 1
    %v5 = vld [vmem:[%s0] sm:%s4]
    %6 = vst [vmem:[#allocation1] sm:%s4] %v5
    %v7 = vld [vmem:[#allocation1] sm:$0x1]
    %vm8 = vcmask 203776
    %9 = vst.msk [vmem:[#allocation0] sm:$0x1] %vm8, %v7
    %v10 = vld [vmem:[#allocation1] sm:$0x1]
    %11 = vrot.lane.b32.xlu0 %v10, 103
    %v12 = vpop.permute.xlu0 %11
    %vm13 = vcmask 203776
    %s14 = scalar_lea.vmem [#allocation0], 1
    %15 = vst.msk [vmem:[%s14] sm:$0x1] %vm13, %v12
    %v16 = vld [vmem:[#allocation1] sm:$0x1]
    %17 = vrot.lane.b32.xlu0 %v16, 78
    %v18 = vpop.permute.xlu0 %17
    %vm19 = vcmask 203776
    %s20 = scalar_lea.vmem [#allocation0], 2
    %21 = vst.msk [vmem:[%s20] sm:$0x1] %vm19, %v18
    %s23 = sshll.u32 1, 4
    %s24 = ssub.s32 %s23, 1
    %v26 = vld [vmem:[#allocation0] sm:%s24]
    %s27 = sshll.u32 1, 4
    %s28 = ssub.s32 %s27, 1
    %29 = vst [vmem:[%s1] sm:%s28] %v26

// kernel: embed_forward.1
$region0: #{embed_forward.1}
  #allocation0 [shape = 'u32[]', space=smem, size = 0x4, offset = 0x4, fixed_abs, tag = 'smem constant byte address 0x4 - core index']
  #allocation1 [shape = 'u32[144,128]{1,0:T(1,128)}', space=vmem, size = 0x12000, scoped, tag = 'internal scratch']
  %s0 = inlined_call_operand.vmem [shape: f32[2,3,25,8], index: 0, kind: input, shape index: {}]
  %s1 = inlined_call_operand.vmem [shape: f32[3,25,64], index: 1, kind: input, shape index: {}]
  %s2 = inlined_call_operand.vmem [shape: f32[25,64], index: 2, kind: input, shape index: {}]
  %s3 = inlined_call_operand.vmem [shape: bf16[64,128], index: 3, kind: input, shape index: {}]
  %s4 = inlined_call_operand.vmem [shape: f32[2,128,200], index: 4, kind: output, shape index: {}]
  %s5 = sld [smem:[#allocation0]]
  $region49: #{embed_forward.1} parent=0
    _
  %s7 = ssub.s32 1, %s5
  %s8 = scalar_select 0, %s7, %s5
  loop: start=0, step=1, limit=4
  $region2: #{embed_forward.1} parent=0 // loop_pre_header
    _
  $region3: #{embed_forward.1} parent=0 // loop_header
    %s10 = sphi 0, %s14
    %p11 = scmp.ge.s32.totalorder %s10, 4
    %s20 = sphi 0, %s22
    %s23 = sphi 0, %s20
    %s24 = sphi 0, %s23
    %s40 = sphi 0, %s24
    %s44 = sphi 0, %s44
    %s46 = sphi 0, %s44
    %s47 = sphi 0, %s46
    %s61 = sphi 0, %s47
    %s65 = sphi 0, %s65
    %s67 = sphi 0, %s65
    %s68 = sphi 0, %s67
    %s82 = sphi 0, %s68
    %s86 = sphi 0, %s86
    %s88 = sphi 0, %s86
    %s89 = sphi 0, %s88
    %s103 = sphi 0, %s89
    %s109 = sphi 0, %s111
    %s112 = sphi 0, %s109
    %s113 = sphi 0, %s112
    %s129 = sphi 0, %s113
  $region4: #{embed_forward.1} parent=0 // loop_header_branch
    %13 = sbr.rel (%p11) target = $region8
  $region5: #{embed_forward.1} parent=0 // loop_body
    %s15 = ssub.s32 %s10, 1
    %s16 = ssub.s32 %s10, 2
    %s17 = sadd.s32 %s10, 1
    %s18 = ssub.s32 %s10, %s17
    %p19 = scmp.eq.s32.totalorder %s18, 0
    %s21 = sadd.s32 %s20, 1
    %s22 = scalar_select %p19, %s20, %s21
    %p25 = pneg %p19
    %p26 = scmp.eq.s32.totalorder %s10, 1
    %p27 = por %p25, %p26
    %p28 = scmp.ne.s32.totalorder %s20, %s23
    %p29 = scmp.eq.s32.totalorder %s10, 0
    %p30 = por %p28, %p29
    %p31 = scmp.ne.s32.totalorder %s20, %s23
    %p32 = scmp.eq.s32.totalorder %s15, 1
    %p33 = por %p31, %p32
    %p34 = scmp.ne.s32.totalorder %s23, %s24
    %p35 = scmp.eq.s32.totalorder %s15, 0
    %p36 = por %p34, %p35
    %p37 = scmp.ne.s32.totalorder %s23, %s24
    %p38 = scmp.eq.s32.totalorder %s16, 1
    %p39 = por %p37, %p38
    %p41 = scmp.ne.s32.totalorder %s24, %s40
    %p42 = scmp.eq.s32.totalorder %s16, 0
    %p43 = por %p41, %p42
    %s45 = sadd.s32 %s44, 1
    %p48 = scmp.eq.s32.totalorder %s10, 1
    %p49 = scmp.ne.s32.totalorder %s44, %s46
    %p50 = scmp.eq.s32.totalorder %s10, 0
    %p51 = por %p49, %p50
    %p52 = scmp.ne.s32.totalorder %s44, %s46
    %p53 = scmp.eq.s32.totalorder %s15, 1
    %p54 = por %p52, %p53
    %p55 = scmp.ne.s32.totalorder %s46, %s47
    %p56 = scmp.eq.s32.totalorder %s15, 0
    %p57 = por %p55, %p56
    %p58 = scmp.ne.s32.totalorder %s46, %s47
    %p59 = scmp.eq.s32.totalorder %s16, 1
    %p60 = por %p58, %p59
    %p62 = scmp.ne.s32.totalorder %s47, %s61
    %p63 = scmp.eq.s32.totalorder %s16, 0
    %p64 = por %p62, %p63
    %s66 = sadd.s32 %s65, 1
    %p69 = scmp.eq.s32.totalorder %s10, 1
    %p70 = scmp.ne.s32.totalorder %s65, %s67
    %p71 = scmp.eq.s32.totalorder %s10, 0
    %p72 = por %p70, %p71
    %p73 = scmp.ne.s32.totalorder %s65, %s67
    %p74 = scmp.eq.s32.totalorder %s15, 1
    %p75 = por %p73, %p74
    %p76 = scmp.ne.s32.totalorder %s67, %s68
    %p77 = scmp.eq.s32.totalorder %s15, 0
    %p78 = por %p76, %p77
    %p79 = scmp.ne.s32.totalorder %s67, %s68
    %p80 = scmp.eq.s32.totalorder %s16, 1
    %p81 = por %p79, %p80
    %p83 = scmp.ne.s32.totalorder %s68, %s82
    %p84 = scmp.eq.s32.totalorder %s16, 0
    %p85 = por %p83, %p84
    %s87 = sadd.s32 %s86, 1
    %p90 = scmp.eq.s32.totalorder %s10, 1
    %p91 = scmp.ne.s32.totalorder %s86, %s88
    %p92 = scmp.eq.s32.totalorder %s10, 0
    %p93 = por %p91, %p92
    %p94 = scmp.ne.s32.totalorder %s86, %s88
    %p95 = scmp.eq.s32.totalorder %s15, 1
    %p96 = por %p94, %p95
    %p97 = scmp.ne.s32.totalorder %s88, %s89
    %p98 = scmp.eq.s32.totalorder %s15, 0
    %p99 = por %p97, %p98
    %p100 = scmp.ne.s32.totalorder %s88, %s89
    %p101 = scmp.eq.s32.totalorder %s16, 1
    %p102 = por %p100, %p101
    %p104 = scmp.ne.s32.totalorder %s89, %s103
    %p105 = scmp.eq.s32.totalorder %s16, 0
    %p106 = por %p104, %p105
    %s107 = ssub.s32 %s10, %s17
    %p108 = scmp.eq.s32.totalorder %s107, 0
    %s110 = sadd.s32 %s109, 1
    %s111 = scalar_select %p108, %s109, %s110
    %p114 = pneg %p108
    %p115 = scmp.eq.s32.totalorder %s10, 1
    %p116 = por %p114, %p115
    %p117 = scmp.ne.s32.totalorder %s109, %s112
    %p118 = scmp.eq.s32.totalorder %s10, 0
    %p119 = por %p117, %p118
    %p120 = scmp.ne.s32.totalorder %s109, %s112
    %p121 = scmp.eq.s32.totalorder %s15, 1
    %p122 = por %p120, %p121
    %p123 = scmp.ne.s32.totalorder %s112, %s113
    %p124 = scmp.eq.s32.totalorder %s15, 0
    %p125 = por %p123, %p124
    %p126 = scmp.ne.s32.totalorder %s112, %s113
    %p127 = scmp.eq.s32.totalorder %s16, 1
    %p128 = por %p126, %p127
    %p130 = scmp.ne.s32.totalorder %s113, %s129
    %p131 = scmp.eq.s32.totalorder %s16, 0
    %p132 = por %p130, %p131
    %p133 = scmp.le.s32.totalorder 1, %s10
    %p134 = scmp.lt.s32.totalorder %s10, 3
    %p135 = pnand %p133, %p134
    %p136 = pneg %p135
    // Predicated region
    $region9: #{embed_forward.1} parent=5 // pred_check
      _
    $region10: #{embed_forward.1} parent=5 // pred_check_branch
      %138 = sbr.rel (%p135) target = $region12
    $region11: #{embed_forward.1} parent=5 // pred_region
      %s139 = ssub.s32 %s10, 1
      // Predicated region
      $region13: #{embed_forward.1} parent=11 // pred_check
        %p140 = pneg %p57
      $region14: #{embed_forward.1} parent=11 // pred_check_branch
        %142 = sbr.rel (%p140) target = $region16
      $region15: #{embed_forward.1} parent=11 // pred_region
        _
      $region16: #{embed_forward.1} parent=11 // pred_fallthru
        _
      // Predicated region
      $region17: #{embed_forward.1} parent=11 // pred_check
        %p143 = pneg %p78
      $region18: #{embed_forward.1} parent=11 // pred_check_branch
        %145 = sbr.rel (%p143) target = $region20
      $region19: #{embed_forward.1} parent=11 // pred_region
        _
      $region20: #{embed_forward.1} parent=11 // pred_fallthru
        _
      // Predicated region
      $region21: #{embed_forward.1} parent=11 // pred_check
        %p146 = pneg %p99
      $region22: #{embed_forward.1} parent=11 // pred_check_branch
        %148 = sbr.rel (%p146) target = $region24
      $region23: #{embed_forward.1} parent=11 // pred_region
        _
      $region24: #{embed_forward.1} parent=11 // pred_fallthru
        _
    $region12: #{embed_forward.1} parent=5 // pred_fallthru
      _
    %p149 = scmp.lt.s32.totalorder %s10, 2
    // Predicated region
    $region25: #{embed_forward.1} parent=5 // pred_check
      %p150 = pneg %p149
    $region26: #{embed_forward.1} parent=5 // pred_check_branch
      %152 = sbr.rel (%p150) target = $region28
    $region27: #{embed_forward.1} parent=5 // pred_region
      // Predicated region
      $region29: #{embed_forward.1} parent=27 // pred_check
        %p153 = pneg %p30
      $region30: #{embed_forward.1} parent=27 // pred_check_branch
        %155 = sbr.rel (%p153) target = $region32
      $region31: #{embed_forward.1} parent=27 // pred_region
        %p156 = scmp.lt.s32.totalorder %s10, 1
        %s157 = scalar_select %p156, %s10, 1
        %s158 = smul.addr %s157, 12
        %s159 = smul.addr %s158, 8
        %s160 = scalar_lea.vmem %s0, %s159
      $region32: #{embed_forward.1} parent=27 // pred_fallthru
        _
    $region28: #{embed_forward.1} parent=5 // pred_fallthru
      _
    %p161 = scmp.le.s32.totalorder 1, %s10
    %p162 = scmp.lt.s32.totalorder %s10, 3
    %p163 = pnand %p161, %p162
    %p164 = pneg %p163
    // Predicated region
    $region33: #{embed_forward.1} parent=5 // pred_check
      _
    $region34: #{embed_forward.1} parent=5 // pred_check_branch
      %166 = sbr.rel (%p163) target = $region36
    $region35: #{embed_forward.1} parent=5 // pred_region
      %s167 = ssub.s32 %s10, 1
      %p168 = scmp.lt.s32.totalorder %s15, 1
      %s169 = scalar_select %p168, %s15, 1
      %s170 = smul.addr %s169, 12
      %s171 = smul.addr %s170, 8
      %s172 = scalar_lea.vmem %s0, %s171
      %p173 = pneg %p36
      %p174 = pneg %p33
      %p175 = pneg %p57
      %p176 = pneg %p54
      %p177 = pneg %p78
      %p178 = pneg %p75
      %p179 = pneg %p99
      %p180 = pneg %p96
      %p181 = pneg %p125
      %p182 = pneg %p122
      %p183 = scmp.lt.s32.totalorder %s15, 1
      %s184 = scalar_select %p183, %s15, 1
      %s185 = smul.addr %s184, 32
      %s186 = smul.addr %s185, 8
      %s187 = scalar_lea.vmem %s4, %s186
      %p188 = scmp.lt.s32.totalorder %s15, 1
      %s189 = scalar_select %p188, %s15, 1
      %s190 = smul.addr %s189, 12
      %s191 = smul.addr %s190, 8
      %s192 = scalar_lea.vmem %s0, %s191
      %p193 = scmp.lt.s32.totalorder %s15, 1
      %s194 = scalar_select %p193, %s15, 1
      %s195 = smul.addr %s194, 32
      %s196 = smul.addr %s195, 8
      %s197 = scalar_lea.vmem %s4, %s196
      %v199 = vld [vmem:[%s2] sm:$0xff]
      %v200 = vld [vmem:[%s2 + $0x8] sm:$0xff]
      %v201 = vld [vmem:[%s2 + $0x10] sm:$0xff]
      %v202 = vld [vmem:[%s2 + $0x18] sm:$0x1]
      %v207 = vcombine.high %v199, %v199
      %v209 = vunpack.c.l.s4 1966171168
      %v210 = vunpack.c.0.s8 %v209
      %v211 = vlaneseq
      %v212 = vshrl.u32 %v211, 7
      %v213 = vsub.s32 %v210, %v212
      %v214 = vrot.slane %v199, %v213
      %v216 = vunpack.c.l.s4 1966171168
      %v217 = vunpack.c.0.s8 %v216
      %v218 = vlaneseq
      %v219 = vshrl.u32 %v218, 7
      %v220 = vsub.s32 %v217, %v219
      %v221 = vrot.slane %v207, %v220
      %v222 = vcombine.high %v214, %v214
      %v223 = vcombine.high %v221, %v221
      %v225 = vunpack.c.l.s4 1966171168
      %v226 = vunpack.c.0.s8 %v225
      %v227 = vlaneseq
      %v228 = vshrl.u32 %v227, 7
      %v229 = vsub.s32 %v226, %v228
      %v230 = vrot.slane %v214, %v229
      %v232 = vunpack.c.l.s4 1966171168
      %v233 = vunpack.c.0.s8 %v232
      %v234 = vlaneseq
      %v235 = vshrl.u32 %v234, 7
      %v236 = vsub.s32 %v233, %v235
      %v237 = vrot.slane %v221, %v236
      %v239 = vunpack.c.l.s4 1966171168
      %v240 = vunpack.c.0.s8 %v239
      %v241 = vlaneseq
      %v242 = vshrl.u32 %v241, 7
      %v243 = vsub.s32 %v240, %v242
      %v244 = vrot.slane %v222, %v243
      %v246 = vunpack.c.l.s4 1966171168
      %v247 = vunpack.c.0.s8 %v246
      %v248 = vlaneseq
      %v249 = vshrl.u32 %v248, 7
      %v250 = vsub.s32 %v247, %v249
      %v251 = vrot.slane %v223, %v250
      %v252 = vcombine.high %v230, %v230
      %v253 = vcombine.high %v237, %v237
      %v254 = vcombine.high %v244, %v244
      %v255 = vcombine.high %v251, %v251
      %v256 = vcombine.high %v200, %v200
      %v258 = vunpack.c.l.s4 1966171168
      %v259 = vunpack.c.0.s8 %v258
      %v260 = vlaneseq
      %v261 = vshrl.u32 %v260, 7
      %v262 = vsub.s32 %v259, %v261
      %v263 = vrot.slane %v200, %v262
      %v265 = vunpack.c.l.s4 1966171168
      %v266 = vunpack.c.0.s8 %v265
      %v267 = vlaneseq
      %v268 = vshrl.u32 %v267, 7
      %v269 = vsub.s32 %v266, %v268
      %v270 = vrot.slane %v256, %v269
      %v271 = vcombine.high %v263, %v263
      %v272 = vcombine.high %v270, %v270
      %v274 = vunpack.c.l.s4 1966171168
      %v275 = vunpack.c.0.s8 %v274
      %v276 = vlaneseq
      %v277 = vshrl.u32 %v276, 7
      %v278 = vsub.s32 %v275, %v277
      %v279 = vrot.slane %v263, %v278
      %v281 = vunpack.c.l.s4 1966171168
      %v282 = vunpack.c.0.s8 %v281
      %v283 = vlaneseq
      %v284 = vshrl.u32 %v283, 7
      %v285 = vsub.s32 %v282, %v284
      %v286 = vrot.slane %v270, %v285
      %v288 = vunpack.c.l.s4 1966171168
      %v289 = vunpack.c.0.s8 %v288
      %v290 = vlaneseq
      %v291 = vshrl.u32 %v290, 7
      %v292 = vsub.s32 %v289, %v291
      %v293 = vrot.slane %v271, %v292
      %v295 = vunpack.c.l.s4 1966171168
      %v296 = vunpack.c.0.s8 %v295
      %v297 = vlaneseq
      %v298 = vshrl.u32 %v297, 7
      %v299 = vsub.s32 %v296, %v298
      %v300 = vrot.slane %v272, %v299
      %v301 = vcombine.high %v279, %v279
      %v302 = vcombine.high %v286, %v286
      %v303 = vcombine.high %v293, %v293
      %v304 = vcombine.high %v300, %v300
      %v305 = vcombine.high %v201, %v201
      %v307 = vunpack.c.l.s4 1966171168
      %v308 = vunpack.c.0.s8 %v307
      %v309 = vlaneseq
      %v310 = vshrl.u32 %v309, 7
      %v311 = vsub.s32 %v308, %v310
      %v312 = vrot.slane %v201, %v311
      %v314 = vunpack.c.l.s4 1966171168
      %v315 = vunpack.c.0.s8 %v314
      %v316 = vlaneseq
      %v317 = vshrl.u32 %v316, 7
      %v318 = vsub.s32 %v315, %v317
      %v319 = vrot.slane %v305, %v318
      %v320 = vcombine.high %v312, %v312
      %v321 = vcombine.high %v319, %v319
      %v323 = vunpack.c.l.s4 1966171168
      %v324 = vunpack.c.0.s8 %v323
      %v325 = vlaneseq
      %v326 = vshrl.u32 %v325, 7
      %v327 = vsub.s32 %v324, %v326
      %v328 = vrot.slane %v312, %v327
      %v330 = vunpack.c.l.s4 1966171168
      %v331 = vunpack.c.0.s8 %v330
      %v332 = vlaneseq
      %v333 = vshrl.u32 %v332, 7
      %v334 = vsub.s32 %v331, %v333
      %v335 = vrot.slane %v319, %v334
      %v337 = vunpack.c.l.s4 1966171168
      %v338 = vunpack.c.0.s8 %v337
      %v339 = vlaneseq
      %v340 = vshrl.u32 %v339, 7
      %v341 = vsub.s32 %v338, %v340
      %v342 = vrot.slane %v320, %v341
      %v344 = vunpack.c.l.s4 1966171168
      %v345 = vunpack.c.0.s8 %v344
      %v346 = vlaneseq
      %v347 = vshrl.u32 %v346, 7
      %v348 = vsub.s32 %v345, %v347
      %v349 = vrot.slane %v321, %v348
      %v350 = vcombine.high %v328, %v328
      %v351 = vcombine.high %v335, %v335
      %v352 = vcombine.high %v342, %v342
      %v353 = vcombine.high %v349, %v349
      %v355 = vunpack.c.l.s4 1966171168
      %v356 = vunpack.c.0.s8 %v355
      %v357 = vlaneseq
      %v358 = vshrl.u32 %v357, 7
      %v359 = vsub.s32 %v356, %v358
      %v360 = vrot.slane %v202, %v359
      %v362 = vunpack.c.l.s4 1966171168
      %v363 = vunpack.c.0.s8 %v362
      %v364 = vlaneseq
      %v365 = vshrl.u32 %v364, 7
      %v366 = vsub.s32 %v363, %v365
      %v367 = vrot.slane %v360, %v366
      %v368 = vld [vmem:[%s192] sm:$0xff]
      %v369 = vld [vmem:[%s192 + $0x8] sm:$0xff]
      %v370 = vld [vmem:[%s192 + $0x10] sm:$0xff]
      %v371 = vld [vmem:[%s192 + $0x18] sm:$0x1]
      %v372 = vlaneseq
      %v373 = vshrl.u32 %v372, 7
      %v374 = vsub.s32 0, %v373
      %v375 = vrot.slane %v368, %v374
      %377 = vbcast.lane.b32.xlu0 %v375, 256
      %v378 = vpop.permute.xlu0 %377
      %v379 = vlaneseq
      %v380 = vshrl.u32 %v379, 7
      %v381 = vsub.s32 1, %v380
      %v382 = vrot.slane %v368, %v381
      %384 = vbcast.lane.b32.xlu0 %v382, 256
      %v385 = vpop.permute.xlu0 %384
      %v386 = vlaneseq
      %v387 = vshrl.u32 %v386, 7
      %v388 = vsub.s32 2, %v387
      %v389 = vrot.slane %v368, %v388
      %391 = vbcast.lane.b32.xlu0 %v389, 256
      %v392 = vpop.permute.xlu0 %391
      %v393 = vlaneseq
      %v394 = vshrl.u32 %v393, 7
      %v395 = vsub.s32 3, %v394
      %v396 = vrot.slane %v368, %v395
      %398 = vbcast.lane.b32.xlu0 %v396, 256
      %v399 = vpop.permute.xlu0 %398
      %v400 = vlaneseq
      %v401 = vshrl.u32 %v400, 7
      %v402 = vsub.s32 4, %v401
      %v403 = vrot.slane %v368, %v402
      %405 = vbcast.lane.b32.xlu0 %v403, 256
      %v406 = vpop.permute.xlu0 %405
      %v407 = vlaneseq
      %v408 = vshrl.u32 %v407, 7
      %v409 = vsub.s32 5, %v408
      %v410 = vrot.slane %v368, %v409
      %412 = vbcast.lane.b32.xlu0 %v410, 256
      %v413 = vpop.permute.xlu0 %412
      %v414 = vlaneseq
      %v415 = vshrl.u32 %v414, 7
      %v416 = vsub.s32 6, %v415
      %v417 = vrot.slane %v368, %v416
      %419 = vbcast.lane.b32.xlu0 %v417, 256
      %v420 = vpop.permute.xlu0 %419
      %v421 = vlaneseq
      %v422 = vshrl.u32 %v421, 7
      %v423 = vsub.s32 7, %v422
      %v424 = vrot.slane %v368, %v423
      %426 = vbcast.lane.b32.xlu0 %v424, 256
      %v427 = vpop.permute.xlu0 %426
      %v428 = vlaneseq
      %v429 = vshrl.u32 %v428, 7
      %v430 = vsub.s32 0, %v429
      %v431 = vrot.slane %v369, %v430
      %433 = vbcast.lane.b32.xlu0 %v431, 256
      %v434 = vpop.permute.xlu0 %433
      %v435 = vlaneseq
      %v436 = vshrl.u32 %v435, 7
      %v437 = vsub.s32 1, %v436
      %v438 = vrot.slane %v369, %v437
      %440 = vbcast.lane.b32.xlu0 %v438, 256
      %v441 = vpop.permute.xlu0 %440
      %v442 = vlaneseq
      %v443 = vshrl.u32 %v442, 7
      %v444 = vsub.s32 2, %v443
      %v445 = vrot.slane %v369, %v444
      %447 = vbcast.lane.b32.xlu0 %v445, 256
      %v448 = vpop.permute.xlu0 %447
      %v449 = vlaneseq
      %v450 = vshrl.u32 %v449, 7
      %v451 = vsub.s32 3, %v450
      %v452 = vrot.slane %v369, %v451
      %454 = vbcast.lane.b32.xlu0 %v452, 256
      %v455 = vpop.permute.xlu0 %454
      %v456 = vlaneseq
      %v457 = vshrl.u32 %v456, 7
      %v458 = vsub.s32 4, %v457
      %v459 = vrot.slane %v369, %v458
      %461 = vbcast.lane.b32.xlu0 %v459, 256
      %v462 = vpop.permute.xlu0 %461
      %v463 = vlaneseq
      %v464 = vshrl.u32 %v463, 7
      %v465 = vsub.s32 5, %v464
      %v466 = vrot.slane %v369, %v465
      %468 = vbcast.lane.b32.xlu0 %v466, 256
      %v469 = vpop.permute.xlu0 %468
      %v470 = vlaneseq
      %v471 = vshrl.u32 %v470, 7
      %v472 = vsub.s32 6, %v471
      %v473 = vrot.slane %v369, %v472
      %475 = vbcast.lane.b32.xlu0 %v473, 256
      %v476 = vpop.permute.xlu0 %475
      %v477 = vlaneseq
      %v478 = vshrl.u32 %v477, 7
      %v479 = vsub.s32 7, %v478
      %v480 = vrot.slane %v369, %v479
      %482 = vbcast.lane.b32.xlu0 %v480, 256
      %v483 = vpop.permute.xlu0 %482
      %v484 = vlaneseq
      %v485 = vshrl.u32 %v484, 7
      %v486 = vsub.s32 0, %v485
      %v487 = vrot.slane %v370, %v486
      %489 = vbcast.lane.b32.xlu0 %v487, 256
      %v490 = vpop.permute.xlu0 %489
      %v491 = vlaneseq
      %v492 = vshrl.u32 %v491, 7
      %v493 = vsub.s32 1, %v492
      %v494 = vrot.slane %v370, %v493
      %496 = vbcast.lane.b32.xlu0 %v494, 256
      %v497 = vpop.permute.xlu0 %496
      %v498 = vlaneseq
      %v499 = vshrl.u32 %v498, 7
      %v500 = vsub.s32 2, %v499
      %v501 = vrot.slane %v370, %v500
      %503 = vbcast.lane.b32.xlu0 %v501, 256
      %v504 = vpop.permute.xlu0 %503
      %v505 = vlaneseq
      %v506 = vshrl.u32 %v505, 7
      %v507 = vsub.s32 3, %v506
      %v508 = vrot.slane %v370, %v507
      %510 = vbcast.lane.b32.xlu0 %v508, 256
      %v511 = vpop.permute.xlu0 %510
      %v512 = vlaneseq
      %v513 = vshrl.u32 %v512, 7
      %v514 = vsub.s32 4, %v513
      %v515 = vrot.slane %v370, %v514
      %517 = vbcast.lane.b32.xlu0 %v515, 256
      %v518 = vpop.permute.xlu0 %517
      %v519 = vlaneseq
      %v520 = vshrl.u32 %v519, 7
      %v521 = vsub.s32 5, %v520
      %v522 = vrot.slane %v370, %v521
      %524 = vbcast.lane.b32.xlu0 %v522, 256
      %v525 = vpop.permute.xlu0 %524
      %v526 = vlaneseq
      %v527 = vshrl.u32 %v526, 7
      %v528 = vsub.s32 6, %v527
      %v529 = vrot.slane %v370, %v528
      %531 = vbcast.lane.b32.xlu0 %v529, 256
      %v532 = vpop.permute.xlu0 %531
      %v533 = vlaneseq
      %v534 = vshrl.u32 %v533, 7
      %v535 = vsub.s32 7, %v534
      %v536 = vrot.slane %v370, %v535
      %538 = vbcast.lane.b32.xlu0 %v536, 256
      %v539 = vpop.permute.xlu0 %538
      %v540 = vlaneseq
      %v541 = vshrl.u32 %v540, 7
      %v542 = vsub.s32 0, %v541
      %v543 = vrot.slane %v371, %v542
      %545 = vbcast.lane.b32.xlu0 %v543, 256
      %v546 = vpop.permute.xlu0 %545
      %v547 = vld [vmem:[%s1] sm:$0xff]
      %v548 = vld [vmem:[%s1 + $0x8] sm:$0xff]
      %v549 = vld [vmem:[%s1 + $0x10] sm:$0xff]
      %v550 = vld [vmem:[%s1 + $0x18] sm:$0x1]
      %v555 = vcombine.high %v547, %v547
      %v557 = vunpack.c.l.s4 1966171168
      %v558 = vunpack.c.0.s8 %v557
      %v559 = vlaneseq
      %v560 = vshrl.u32 %v559, 7
      %v561 = vsub.s32 %v558, %v560
      %v562 = vrot.slane %v547, %v561
      %v564 = vunpack.c.l.s4 1966171168
      %v565 = vunpack.c.0.s8 %v564
      %v566 = vlaneseq
      %v567 = vshrl.u32 %v566, 7
      %v568 = vsub.s32 %v565, %v567
      %v569 = vrot.slane %v555, %v568
      %v570 = vcombine.high %v562, %v562
      %v571 = vcombine.high %v569, %v569
      %v573 = vunpack.c.l.s4 1966171168
      %v574 = vunpack.c.0.s8 %v573
      %v575 = vlaneseq
      %v576 = vshrl.u32 %v575, 7
      %v577 = vsub.s32 %v574, %v576
      %v578 = vrot.slane %v562, %v577
      %v580 = vunpack.c.l.s4 1966171168
      %v581 = vunpack.c.0.s8 %v580
      %v582 = vlaneseq
      %v583 = vshrl.u32 %v582, 7
      %v584 = vsub.s32 %v581, %v583
      %v585 = vrot.slane %v569, %v584
      %v587 = vunpack.c.l.s4 1966171168
      %v588 = vunpack.c.0.s8 %v587
      %v589 = vlaneseq
      %v590 = vshrl.u32 %v589, 7
      %v591 = vsub.s32 %v588, %v590
      %v592 = vrot.slane %v570, %v591
      %v594 = vunpack.c.l.s4 1966171168
      %v595 = vunpack.c.0.s8 %v594
      %v596 = vlaneseq
      %v597 = vshrl.u32 %v596, 7
      %v598 = vsub.s32 %v595, %v597
      %v599 = vrot.slane %v571, %v598
      %v600 = vcombine.high %v578, %v578
      %v601 = vcombine.high %v585, %v585
      %v602 = vcombine.high %v592, %v592
      %v603 = vcombine.high %v599, %v599
      %v604 = vcombine.high %v548, %v548
      %v606 = vunpack.c.l.s4 1966171168
      %v607 = vunpack.c.0.s8 %v606
      %v608 = vlaneseq
      %v609 = vshrl.u32 %v608, 7
      %v610 = vsub.s32 %v607, %v609
      %v611 = vrot.slane %v548, %v610
      %v613 = vunpack.c.l.s4 1966171168
      %v614 = vunpack.c.0.s8 %v613
      %v615 = vlaneseq
      %v616 = vshrl.u32 %v615, 7
      %v617 = vsub.s32 %v614, %v616
      %v618 = vrot.slane %v604, %v617
      %v619 = vcombine.high %v611, %v611
      %v620 = vcombine.high %v618, %v618
      %v622 = vunpack.c.l.s4 1966171168
      %v623 = vunpack.c.0.s8 %v622
      %v624 = vlaneseq
      %v625 = vshrl.u32 %v624, 7
      %v626 = vsub.s32 %v623, %v625
      %v627 = vrot.slane %v611, %v626
      %v629 = vunpack.c.l.s4 1966171168
      %v630 = vunpack.c.0.s8 %v629
      %v631 = vlaneseq
      %v632 = vshrl.u32 %v631, 7
      %v633 = vsub.s32 %v630, %v632
      %v634 = vrot.slane %v618, %v633
      %v636 = vunpack.c.l.s4 1966171168
      %v637 = vunpack.c.0.s8 %v636
      %v638 = vlaneseq
      %v639 = vshrl.u32 %v638, 7
      %v640 = vsub.s32 %v637, %v639
      %v641 = vrot.slane %v619, %v640
      %v643 = vunpack.c.l.s4 1966171168
      %v644 = vunpack.c.0.s8 %v643
      %v645 = vlaneseq
      %v646 = vshrl.u32 %v645, 7
      %v647 = vsub.s32 %v644, %v646
      %v648 = vrot.slane %v620, %v647
      %v649 = vcombine.high %v627, %v627
      %v650 = vcombine.high %v634, %v634
      %v651 = vcombine.high %v641, %v641
      %v652 = vcombine.high %v648, %v648
      %v653 = vcombine.high %v549, %v549
      %v655 = vunpack.c.l.s4 1966171168
      %v656 = vunpack.c.0.s8 %v655
      %v657 = vlaneseq
      %v658 = vshrl.u32 %v657, 7
      %v659 = vsub.s32 %v656, %v658
      %v660 = vrot.slane %v549, %v659
      %v662 = vunpack.c.l.s4 1966171168
      %v663 = vunpack.c.0.s8 %v662
      %v664 = vlaneseq
      %v665 = vshrl.u32 %v664, 7
      %v666 = vsub.s32 %v663, %v665
      %v667 = vrot.slane %v653, %v666
      %v668 = vcombine.high %v660, %v660
      %v669 = vcombine.high %v667, %v667
      %v671 = vunpack.c.l.s4 1966171168
      %v672 = vunpack.c.0.s8 %v671
      %v673 = vlaneseq
      %v674 = vshrl.u32 %v673, 7
      %v675 = vsub.s32 %v672, %v674
      %v676 = vrot.slane %v660, %v675
      %v678 = vunpack.c.l.s4 1966171168
      %v679 = vunpack.c.0.s8 %v678
      %v680 = vlaneseq
      %v681 = vshrl.u32 %v680, 7
      %v682 = vsub.s32 %v679, %v681
      %v683 = vrot.slane %v667, %v682
      %v685 = vunpack.c.l.s4 1966171168
      %v686 = vunpack.c.0.s8 %v685
      %v687 = vlaneseq
      %v688 = vshrl.u32 %v687, 7
      %v689 = vsub.s32 %v686, %v688
      %v690 = vrot.slane %v668, %v689
      %v692 = vunpack.c.l.s4 1966171168
      %v693 = vunpack.c.0.s8 %v692
      %v694 = vlaneseq
      %v695 = vshrl.u32 %v694, 7
      %v696 = vsub.s32 %v693, %v695
      %v697 = vrot.slane %v669, %v696
      %v698 = vcombine.high %v676, %v676
      %v699 = vcombine.high %v683, %v683
      %v700 = vcombine.high %v690, %v690
      %v701 = vcombine.high %v697, %v697
      %v703 = vunpack.c.l.s4 1966171168
      %v704 = vunpack.c.0.s8 %v703
      %v705 = vlaneseq
      %v706 = vshrl.u32 %v705, 7
      %v707 = vsub.s32 %v704, %v706
      %v708 = vrot.slane %v550, %v707
      %v710 = vunpack.c.l.s4 1966171168
      %v711 = vunpack.c.0.s8 %v710
      %v712 = vlaneseq
      %v713 = vshrl.u32 %v712, 7
      %v714 = vsub.s32 %v711, %v713
      %v715 = vrot.slane %v708, %v714
      %v716 = vlaneseq
      %v717 = vshrl.u32 %v716, 7
      %v718 = vsub.s32 0, %v717
      %v719 = vrot.slane %v578, %v718
      %v720 = vlaneseq
      %v721 = vshrl.u32 %v720, 7
      %v722 = vsub.s32 0, %v721
      %v723 = vrot.slane %v592, %v722
      %v724 = vlaneseq
      %v725 = vshrl.u32 %v724, 7
      %v726 = vsub.s32 0, %v725
      %v727 = vrot.slane %v600, %v726
      %v728 = vlaneseq
      %v729 = vshrl.u32 %v728, 7
      %v730 = vsub.s32 0, %v729
      %v731 = vrot.slane %v602, %v730
      %v732 = vlaneseq
      %v733 = vshrl.u32 %v732, 7
      %v734 = vsub.s32 0, %v733
      %v735 = vrot.slane %v585, %v734
      %v736 = vlaneseq
      %v737 = vshrl.u32 %v736, 7
      %v738 = vsub.s32 0, %v737
      %v739 = vrot.slane %v599, %v738
      %v740 = vlaneseq
      %v741 = vshrl.u32 %v740, 7
      %v742 = vsub.s32 0, %v741
      %v743 = vrot.slane %v601, %v742
      %v744 = vlaneseq
      %v745 = vshrl.u32 %v744, 7
      %v746 = vsub.s32 0, %v745
      %v747 = vrot.slane %v603, %v746
      %v748 = vlaneseq
      %v749 = vshrl.u32 %v748, 7
      %v750 = vsub.s32 0, %v749
      %v751 = vrot.slane %v627, %v750
      %v752 = vlaneseq
      %v753 = vshrl.u32 %v752, 7
      %v754 = vsub.s32 0, %v753
      %v755 = vrot.slane %v641, %v754
      %v756 = vlaneseq
      %v757 = vshrl.u32 %v756, 7
      %v758 = vsub.s32 0, %v757
      %v759 = vrot.slane %v649, %v758
      %v760 = vlaneseq
      %v761 = vshrl.u32 %v760, 7
      %v762 = vsub.s32 0, %v761
      %v763 = vrot.slane %v651, %v762
      %v764 = vlaneseq
      %v765 = vshrl.u32 %v764, 7
      %v766 = vsub.s32 0, %v765
      %v767 = vrot.slane %v634, %v766
      %v768 = vlaneseq
      %v769 = vshrl.u32 %v768, 7
      %v770 = vsub.s32 0, %v769
      %v771 = vrot.slane %v648, %v770
      %v772 = vlaneseq
      %v773 = vshrl.u32 %v772, 7
      %v774 = vsub.s32 0, %v773
      %v775 = vrot.slane %v650, %v774
      %v776 = vlaneseq
      %v777 = vshrl.u32 %v776, 7
      %v778 = vsub.s32 0, %v777
      %v779 = vrot.slane %v652, %v778
      %v780 = vlaneseq
      %v781 = vshrl.u32 %v780, 7
      %v782 = vsub.s32 0, %v781
      %v783 = vrot.slane %v676, %v782
      %v784 = vlaneseq
      %v785 = vshrl.u32 %v784, 7
      %v786 = vsub.s32 0, %v785
      %v787 = vrot.slane %v690, %v786
      %v788 = vlaneseq
      %v789 = vshrl.u32 %v788, 7
      %v790 = vsub.s32 0, %v789
      %v791 = vrot.slane %v698, %v790
      %v792 = vlaneseq
      %v793 = vshrl.u32 %v792, 7
      %v794 = vsub.s32 0, %v793
      %v795 = vrot.slane %v700, %v794
      %v796 = vlaneseq
      %v797 = vshrl.u32 %v796, 7
      %v798 = vsub.s32 0, %v797
      %v799 = vrot.slane %v683, %v798
      %v800 = vlaneseq
      %v801 = vshrl.u32 %v800, 7
      %v802 = vsub.s32 0, %v801
      %v803 = vrot.slane %v697, %v802
      %v804 = vlaneseq
      %v805 = vshrl.u32 %v804, 7
      %v806 = vsub.s32 0, %v805
      %v807 = vrot.slane %v699, %v806
      %v808 = vlaneseq
      %v809 = vshrl.u32 %v808, 7
      %v810 = vsub.s32 0, %v809
      %v811 = vrot.slane %v701, %v810
      %v812 = vlaneseq
      %v813 = vshrl.u32 %v812, 7
      %v814 = vsub.s32 0, %v813
      %v815 = vrot.slane %v715, %v814
      %v841 = vmul.f32 %v378, %v719
      %v842 = vmul.f32 %v385, %v723
      %v843 = vmul.f32 %v392, %v727
      %v844 = vmul.f32 %v399, %v731
      %v845 = vmul.f32 %v406, %v735
      %v846 = vmul.f32 %v413, %v739
      %v847 = vmul.f32 %v420, %v743
      %v848 = vmul.f32 %v427, %v747
      %v849 = vmul.f32 %v434, %v751
      %v850 = vmul.f32 %v441, %v755
      %v851 = vmul.f32 %v448, %v759
      %v852 = vmul.f32 %v455, %v763
      %v853 = vmul.f32 %v462, %v767
      %v854 = vmul.f32 %v469, %v771
      %v855 = vmul.f32 %v476, %v775
      %v856 = vmul.f32 %v483, %v779
      %v857 = vmul.f32 %v490, %v783
      %v858 = vmul.f32 %v497, %v787
      %v859 = vmul.f32 %v504, %v791
      %v860 = vmul.f32 %v511, %v795
      %v861 = vmul.f32 %v518, %v799
      %v862 = vmul.f32 %v525, %v803
      %v863 = vmul.f32 %v532, %v807
      %v864 = vmul.f32 %v539, %v811
      %v865 = vmul.f32 %v546, %v815
      %v866 = vlaneseq
      %v867 = vshrl.u32 %v866, 7
      %v868 = vsub.s32 0, %v867
      %v869 = vrot.slane %v230, %v868
      %v870 = vlaneseq
      %v871 = vshrl.u32 %v870, 7
      %v872 = vsub.s32 0, %v871
      %v873 = vrot.slane %v244, %v872
      %v874 = vlaneseq
      %v875 = vshrl.u32 %v874, 7
      %v876 = vsub.s32 0, %v875
      %v877 = vrot.slane %v252, %v876
      %v878 = vlaneseq
      %v879 = vshrl.u32 %v878, 7
      %v880 = vsub.s32 0, %v879
      %v881 = vrot.slane %v254, %v880
      %v882 = vlaneseq
      %v883 = vshrl.u32 %v882, 7
      %v884 = vsub.s32 0, %v883
      %v885 = vrot.slane %v237, %v884
      %v886 = vlaneseq
      %v887 = vshrl.u32 %v886, 7
      %v888 = vsub.s32 0, %v887
      %v889 = vrot.slane %v251, %v888
      %v890 = vlaneseq
      %v891 = vshrl.u32 %v890, 7
      %v892 = vsub.s32 0, %v891
      %v893 = vrot.slane %v253, %v892
      %v894 = vlaneseq
      %v895 = vshrl.u32 %v894, 7
      %v896 = vsub.s32 0, %v895
      %v897 = vrot.slane %v255, %v896
      %v898 = vlaneseq
      %v899 = vshrl.u32 %v898, 7
      %v900 = vsub.s32 0, %v899
      %v901 = vrot.slane %v279, %v900
      %v902 = vlaneseq
      %v903 = vshrl.u32 %v902, 7
      %v904 = vsub.s32 0, %v903
      %v905 = vrot.slane %v293, %v904
      %v906 = vlaneseq
      %v907 = vshrl.u32 %v906, 7
      %v908 = vsub.s32 0, %v907
      %v909 = vrot.slane %v301, %v908
      %v910 = vlaneseq
      %v911 = vshrl.u32 %v910, 7
      %v912 = vsub.s32 0, %v911
      %v913 = vrot.slane %v303, %v912
      %v914 = vlaneseq
      %v915 = vshrl.u32 %v914, 7
      %v916 = vsub.s32 0, %v915
      %v917 = vrot.slane %v286, %v916
      %v918 = vlaneseq
      %v919 = vshrl.u32 %v918, 7
      %v920 = vsub.s32 0, %v919
      %v921 = vrot.slane %v300, %v920
      %v922 = vlaneseq
      %v923 = vshrl.u32 %v922, 7
      %v924 = vsub.s32 0, %v923
      %v925 = vrot.slane %v302, %v924
      %v926 = vlaneseq
      %v927 = vshrl.u32 %v926, 7
      %v928 = vsub.s32 0, %v927
      %v929 = vrot.slane %v304, %v928
      %v930 = vlaneseq
      %v931 = vshrl.u32 %v930, 7
      %v932 = vsub.s32 0, %v931
      %v933 = vrot.slane %v328, %v932
      %v934 = vlaneseq
      %v935 = vshrl.u32 %v934, 7
      %v936 = vsub.s32 0, %v935
      %v937 = vrot.slane %v342, %v936
      %v938 = vlaneseq
      %v939 = vshrl.u32 %v938, 7
      %v940 = vsub.s32 0, %v939
      %v941 = vrot.slane %v350, %v940
      %v942 = vlaneseq
      %v943 = vshrl.u32 %v942, 7
      %v944 = vsub.s32 0, %v943
      %v945 = vrot.slane %v352, %v944
      %v946 = vlaneseq
      %v947 = vshrl.u32 %v946, 7
      %v948 = vsub.s32 0, %v947
      %v949 = vrot.slane %v335, %v948
      %v950 = vlaneseq
      %v951 = vshrl.u32 %v950, 7
      %v952 = vsub.s32 0, %v951
      %v953 = vrot.slane %v349, %v952
      %v954 = vlaneseq
      %v955 = vshrl.u32 %v954, 7
      %v956 = vsub.s32 0, %v955
      %v957 = vrot.slane %v351, %v956
      %v958 = vlaneseq
      %v959 = vshrl.u32 %v958, 7
      %v960 = vsub.s32 0, %v959
      %v961 = vrot.slane %v353, %v960
      %v962 = vlaneseq
      %v963 = vshrl.u32 %v962, 7
      %v964 = vsub.s32 0, %v963
      %v965 = vrot.slane %v367, %v964
      %v991 = vadd.f32 %v869, %v841
      %v992 = vadd.f32 %v873, %v842
      %v993 = vadd.f32 %v877, %v843
      %v994 = vadd.f32 %v881, %v844
      %v995 = vadd.f32 %v885, %v845
      %v996 = vadd.f32 %v889, %v846
      %v997 = vadd.f32 %v893, %v847
      %v998 = vadd.f32 %v897, %v848
      %v999 = vadd.f32 %v901, %v849
      %v1000 = vadd.f32 %v905, %v850
      %v1001 = vadd.f32 %v909, %v851
      %v1002 = vadd.f32 %v913, %v852
      %v1003 = vadd.f32 %v917, %v853
      %v1004 = vadd.f32 %v921, %v854
      %v1005 = vadd.f32 %v925, %v855
      %v1006 = vadd.f32 %v929, %v856
      %v1007 = vadd.f32 %v933, %v857
      %v1008 = vadd.f32 %v937, %v858
      %v1009 = vadd.f32 %v941, %v859
      %v1010 = vadd.f32 %v945, %v860
      %v1011 = vadd.f32 %v949, %v861
      %v1012 = vadd.f32 %v953, %v862
      %v1013 = vadd.f32 %v957, %v863
      %v1014 = vadd.f32 %v961, %v864
      %v1015 = vadd.f32 %v965, %v865
      %s1016 = scalar_lea.vmem %s192, 32
      %v1017 = vld [vmem:[%s1016] sm:$0xff]
      %v1018 = vld [vmem:[%s1016 + $0x8] sm:$0xff]
      %v1019 = vld [vmem:[%s1016 + $0x10] sm:$0xff]
      %v1020 = vld [vmem:[%s1016 + $0x18] sm:$0x1]
      %v1021 = vlaneseq
      %v1022 = vshrl.u32 %v1021, 7
      %v1023 = vsub.s32 0, %v1022
      %v1024 = vrot.slane %v1017, %v1023
      %1026 = vbcast.lane.b32.xlu0 %v1024, 256
      %v1027 = vpop.permute.xlu0 %1026
      %v1028 = vlaneseq
      %v1029 = vshrl.u32 %v1028, 7
      %v1030 = vsub.s32 1, %v1029
      %v1031 = vrot.slane %v1017, %v1030
      %1033 = vbcast.lane.b32.xlu0 %v1031, 256
      %v1034 = vpop.permute.xlu0 %1033
      %v1035 = vlaneseq
      %v1036 = vshrl.u32 %v1035, 7
      %v1037 = vsub.s32 2, %v1036
      %v1038 = vrot.slane %v1017, %v1037
      %1040 = vbcast.lane.b32.xlu0 %v1038, 256
      %v1041 = vpop.permute.xlu0 %1040
      %v1042 = vlaneseq
      %v1043 = vshrl.u32 %v1042, 7
      %v1044 = vsub.s32 3, %v1043
      %v1045 = vrot.slane %v1017, %v1044
      %1047 = vbcast.lane.b32.xlu0 %v1045, 256
      %v1048 = vpop.permute.xlu0 %1047
      %v1049 = vlaneseq
      %v1050 = vshrl.u32 %v1049, 7
      %v1051 = vsub.s32 4, %v1050
      %v1052 = vrot.slane %v1017, %v1051
      %1054 = vbcast.lane.b32.xlu0 %v1052, 256
      %v1055 = vpop.permute.xlu0 %1054
      %v1056 = vlaneseq
      %v1057 = vshrl.u32 %v1056, 7
      %v1058 = vsub.s32 5, %v1057
      %v1059 = vrot.slane %v1017, %v1058
      %1061 = vbcast.lane.b32.xlu0 %v1059, 256
      %v1062 = vpop.permute.xlu0 %1061
      %v1063 = vlaneseq
      %v1064 = vshrl.u32 %v1063, 7
      %v1065 = vsub.s32 6, %v1064
      %v1066 = vrot.slane %v1017, %v1065
      %1068 = vbcast.lane.b32.xlu0 %v1066, 256
      %v1069 = vpop.permute.xlu0 %1068
      %v1070 = vlaneseq
      %v1071 = vshrl.u32 %v1070, 7
      %v1072 = vsub.s32 7, %v1071
      %v1073 = vrot.slane %v1017, %v1072
      %1075 = vbcast.lane.b32.xlu0 %v1073, 256
      %v1076 = vpop.permute.xlu0 %1075
      %v1077 = vlaneseq
      %v1078 = vshrl.u32 %v1077, 7
      %v1079 = vsub.s32 0, %v1078
      %v1080 = vrot.slane %v1018, %v1079
      %1082 = vbcast.lane.b32.xlu0 %v1080, 256
      %v1083 = vpop.permute.xlu0 %1082
      %v1084 = vlaneseq
      %v1085 = vshrl.u32 %v1084, 7
      %v1086 = vsub.s32 1, %v1085
      %v1087 = vrot.slane %v1018, %v1086
      %1089 = vbcast.lane.b32.xlu0 %v1087, 256
      %v1090 = vpop.permute.xlu0 %1089
      %v1091 = vlaneseq
      %v1092 = vshrl.u32 %v1091, 7
      %v1093 = vsub.s32 2, %v1092
      %v1094 = vrot.slane %v1018, %v1093
      %1096 = vbcast.lane.b32.xlu0 %v1094, 256
      %v1097 = vpop.permute.xlu0 %1096
      %v1098 = vlaneseq
      %v1099 = vshrl.u32 %v1098, 7
      %v1100 = vsub.s32 3, %v1099
      %v1101 = vrot.slane %v1018, %v1100
      %1103 = vbcast.lane.b32.xlu0 %v1101, 256
      %v1104 = vpop.permute.xlu0 %1103
      %v1105 = vlaneseq
      %v1106 = vshrl.u32 %v1105, 7
      %v1107 = vsub.s32 4, %v1106
      %v1108 = vrot.slane %v1018, %v1107
      %1110 = vbcast.lane.b32.xlu0 %v1108, 256
      %v1111 = vpop.permute.xlu0 %1110
      %v1112 = vlaneseq
      %v1113 = vshrl.u32 %v1112, 7
      %v1114 = vsub.s32 5, %v1113
      %v1115 = vrot.slane %v1018, %v1114
      %1117 = vbcast.lane.b32.xlu0 %v1115, 256
      %v1118 = vpop.permute.xlu0 %1117
      %v1119 = vlaneseq
      %v1120 = vshrl.u32 %v1119, 7
      %v1121 = vsub.s32 6, %v1120
      %v1122 = vrot.slane %v1018, %v1121
      %1124 = vbcast.lane.b32.xlu0 %v1122, 256
      %v1125 = vpop.permute.xlu0 %1124
      %v1126 = vlaneseq
      %v1127 = vshrl.u32 %v1126, 7
      %v1128 = vsub.s32 7, %v1127
      %v1129 = vrot.slane %v1018, %v1128
      %1131 = vbcast.lane.b32.xlu0 %v1129, 256
      %v1132 = vpop.permute.xlu0 %1131
      %v1133 = vlaneseq
      %v1134 = vshrl.u32 %v1133, 7
      %v1135 = vsub.s32 0, %v1134
      %v1136 = vrot.slane %v1019, %v1135
      %1138 = vbcast.lane.b32.xlu0 %v1136, 256
      %v1139 = vpop.permute.xlu0 %1138
      %v1140 = vlaneseq
      %v1141 = vshrl.u32 %v1140, 7
      %v1142 = vsub.s32 1, %v1141
      %v1143 = vrot.slane %v1019, %v1142
      %1145 = vbcast.lane.b32.xlu0 %v1143, 256
      %v1146 = vpop.permute.xlu0 %1145
      %v1147 = vlaneseq
      %v1148 = vshrl.u32 %v1147, 7
      %v1149 = vsub.s32 2, %v1148
      %v1150 = vrot.slane %v1019, %v1149
      %1152 = vbcast.lane.b32.xlu0 %v1150, 256
      %v1153 = vpop.permute.xlu0 %1152
      %v1154 = vlaneseq
      %v1155 = vshrl.u32 %v1154, 7
      %v1156 = vsub.s32 3, %v1155
      %v1157 = vrot.slane %v1019, %v1156
      %1159 = vbcast.lane.b32.xlu0 %v1157, 256
      %v1160 = vpop.permute.xlu0 %1159
      %v1161 = vlaneseq
      %v1162 = vshrl.u32 %v1161, 7
      %v1163 = vsub.s32 4, %v1162
      %v1164 = vrot.slane %v1019, %v1163
      %1166 = vbcast.lane.b32.xlu0 %v1164, 256
      %v1167 = vpop.permute.xlu0 %1166
      %v1168 = vlaneseq
      %v1169 = vshrl.u32 %v1168, 7
      %v1170 = vsub.s32 5, %v1169
      %v1171 = vrot.slane %v1019, %v1170
      %1173 = vbcast.lane.b32.xlu0 %v1171, 256
      %v1174 = vpop.permute.xlu0 %1173
      %v1175 = vlaneseq
      %v1176 = vshrl.u32 %v1175, 7
      %v1177 = vsub.s32 6, %v1176
      %v1178 = vrot.slane %v1019, %v1177
      %1180 = vbcast.lane.b32.xlu0 %v1178, 256
      %v1181 = vpop.permute.xlu0 %1180
      %v1182 = vlaneseq
      %v1183 = vshrl.u32 %v1182, 7
      %v1184 = vsub.s32 7, %v1183
      %v1185 = vrot.slane %v1019, %v1184
      %1187 = vbcast.lane.b32.xlu0 %v1185, 256
      %v1188 = vpop.permute.xlu0 %1187
      %v1189 = vlaneseq
      %v1190 = vshrl.u32 %v1189, 7
      %v1191 = vsub.s32 0, %v1190
      %v1192 = vrot.slane %v1020, %v1191
      %1194 = vbcast.lane.b32.xlu0 %v1192, 256
      %v1195 = vpop.permute.xlu0 %1194
      %s1196 = scalar_lea.vmem %s1, 32
      %v1197 = vld [vmem:[%s1196] sm:$0xff]
      %v1198 = vld [vmem:[%s1196 + $0x8] sm:$0xff]
      %v1199 = vld [vmem:[%s1196 + $0x10] sm:$0xff]
      %v1200 = vld [vmem:[%s1196 + $0x18] sm:$0x1]
      %v1205 = vcombine.high %v1197, %v1197
      %v1207 = vunpack.c.l.s4 1966171168
      %v1208 = vunpack.c.0.s8 %v1207
      %v1209 = vlaneseq
      %v1210 = vshrl.u32 %v1209, 7
      %v1211 = vsub.s32 %v1208, %v1210
      %v1212 = vrot.slane %v1197, %v1211
      %v1214 = vunpack.c.l.s4 1966171168
      %v1215 = vunpack.c.0.s8 %v1214
      %v1216 = vlaneseq
      %v1217 = vshrl.u32 %v1216, 7
      %v1218 = vsub.s32 %v1215, %v1217
      %v1219 = vrot.slane %v1205, %v1218
      %v1220 = vcombine.high %v1212, %v1212
      %v1221 = vcombine.high %v1219, %v1219
      %v1223 = vunpack.c.l.s4 1966171168
      %v1224 = vunpack.c.0.s8 %v1223
      %v1225 = vlaneseq
      %v1226 = vshrl.u32 %v1225, 7
      %v1227 = vsub.s32 %v1224, %v1226
      %v1228 = vrot.slane %v1212, %v1227
      %v1230 = vunpack.c.l.s4 1966171168
      %v1231 = vunpack.c.0.s8 %v1230
      %v1232 = vlaneseq
      %v1233 = vshrl.u32 %v1232, 7
      %v1234 = vsub.s32 %v1231, %v1233
      %v1235 = vrot.slane %v1219, %v1234
      %v1237 = vunpack.c.l.s4 1966171168
      %v1238 = vunpack.c.0.s8 %v1237
      %v1239 = vlaneseq
      %v1240 = vshrl.u32 %v1239, 7
      %v1241 = vsub.s32 %v1238, %v1240
      %v1242 = vrot.slane %v1220, %v1241
      %v1244 = vunpack.c.l.s4 1966171168
      %v1245 = vunpack.c.0.s8 %v1244
      %v1246 = vlaneseq
      %v1247 = vshrl.u32 %v1246, 7
      %v1248 = vsub.s32 %v1245, %v1247
      %v1249 = vrot.slane %v1221, %v1248
      %v1250 = vcombine.high %v1228, %v1228
      %v1251 = vcombine.high %v1235, %v1235
      %v1252 = vcombine.high %v1242, %v1242
      %v1253 = vcombine.high %v1249, %v1249
      %v1254 = vcombine.high %v1198, %v1198
      %v1256 = vunpack.c.l.s4 1966171168
      %v1257 = vunpack.c.0.s8 %v1256
      %v1258 = vlaneseq
      %v1259 = vshrl.u32 %v1258, 7
      %v1260 = vsub.s32 %v1257, %v1259
      %v1261 = vrot.slane %v1198, %v1260
      %v1263 = vunpack.c.l.s4 1966171168
      %v1264 = vunpack.c.0.s8 %v1263
      %v1265 = vlaneseq
      %v1266 = vshrl.u32 %v1265, 7
      %v1267 = vsub.s32 %v1264, %v1266
      %v1268 = vrot.slane %v1254, %v1267
      %v1269 = vcombine.high %v1261, %v1261
      %v1270 = vcombine.high %v1268, %v1268
      %v1272 = vunpack.c.l.s4 1966171168
      %v1273 = vunpack.c.0.s8 %v1272
      %v1274 = vlaneseq
      %v1275 = vshrl.u32 %v1274, 7
      %v1276 = vsub.s32 %v1273, %v1275
      %v1277 = vrot.slane %v1261, %v1276
      %v1279 = vunpack.c.l.s4 1966171168
      %v1280 = vunpack.c.0.s8 %v1279
      %v1281 = vlaneseq
      %v1282 = vshrl.u32 %v1281, 7
      %v1283 = vsub.s32 %v1280, %v1282
      %v1284 = vrot.slane %v1268, %v1283
      %v1286 = vunpack.c.l.s4 1966171168
      %v1287 = vunpack.c.0.s8 %v1286
      %v1288 = vlaneseq
      %v1289 = vshrl.u32 %v1288, 7
      %v1290 = vsub.s32 %v1287, %v1289
      %v1291 = vrot.slane %v1269, %v1290
      %v1293 = vunpack.c.l.s4 1966171168
      %v1294 = vunpack.c.0.s8 %v1293
      %v1295 = vlaneseq
      %v1296 = vshrl.u32 %v1295, 7
      %v1297 = vsub.s32 %v1294, %v1296
      %v1298 = vrot.slane %v1270, %v1297
      %v1299 = vcombine.high %v1277, %v1277
      %v1300 = vcombine.high %v1284, %v1284
      %v1301 = vcombine.high %v1291, %v1291
      %v1302 = vcombine.high %v1298, %v1298
      %v1303 = vcombine.high %v1199, %v1199
      %v1305 = vunpack.c.l.s4 1966171168
      %v1306 = vunpack.c.0.s8 %v1305
      %v1307 = vlaneseq
      %v1308 = vshrl.u32 %v1307, 7
      %v1309 = vsub.s32 %v1306, %v1308
      %v1310 = vrot.slane %v1199, %v1309
      %v1312 = vunpack.c.l.s4 1966171168
      %v1313 = vunpack.c.0.s8 %v1312
      %v1314 = vlaneseq
      %v1315 = vshrl.u32 %v1314, 7
      %v1316 = vsub.s32 %v1313, %v1315
      %v1317 = vrot.slane %v1303, %v1316
      %v1318 = vcombine.high %v1310, %v1310
      %v1319 = vcombine.high %v1317, %v1317
      %v1321 = vunpack.c.l.s4 1966171168
      %v1322 = vunpack.c.0.s8 %v1321
      %v1323 = vlaneseq
      %v1324 = vshrl.u32 %v1323, 7
      %v1325 = vsub.s32 %v1322, %v1324
      %v1326 = vrot.slane %v1310, %v1325
      %v1328 = vunpack.c.l.s4 1966171168
      %v1329 = vunpack.c.0.s8 %v1328
      %v1330 = vlaneseq
      %v1331 = vshrl.u32 %v1330, 7
      %v1332 = vsub.s32 %v1329, %v1331
      %v1333 = vrot.slane %v1317, %v1332
      %v1335 = vunpack.c.l.s4 1966171168
      %v1336 = vunpack.c.0.s8 %v1335
      %v1337 = vlaneseq
      %v1338 = vshrl.u32 %v1337, 7
      %v1339 = vsub.s32 %v1336, %v1338
      %v1340 = vrot.slane %v1318, %v1339
      %v1342 = vunpack.c.l.s4 1966171168
      %v1343 = vunpack.c.0.s8 %v1342
      %v1344 = vlaneseq
      %v1345 = vshrl.u32 %v1344, 7
      %v1346 = vsub.s32 %v1343, %v1345
      %v1347 = vrot.slane %v1319, %v1346
      %v1348 = vcombine.high %v1326, %v1326
      %v1349 = vcombine.high %v1333, %v1333
      %v1350 = vcombine.high %v1340, %v1340
      %v1351 = vcombine.high %v1347, %v1347
      %v1353 = vunpack.c.l.s4 1966171168
      %v1354 = vunpack.c.0.s8 %v1353
      %v1355 = vlaneseq
      %v1356 = vshrl.u32 %v1355, 7
      %v1357 = vsub.s32 %v1354, %v1356
      %v1358 = vrot.slane %v1200, %v1357
      %v1360 = vunpack.c.l.s4 1966171168
      %v1361 = vunpack.c.0.s8 %v1360
      %v1362 = vlaneseq
      %v1363 = vshrl.u32 %v1362, 7
      %v1364 = vsub.s32 %v1361, %v1363
      %v1365 = vrot.slane %v1358, %v1364
      %v1366 = vlaneseq
      %v1367 = vshrl.u32 %v1366, 7
      %v1368 = vsub.s32 0, %v1367
      %v1369 = vrot.slane %v1228, %v1368
      %v1370 = vlaneseq
      %v1371 = vshrl.u32 %v1370, 7
      %v1372 = vsub.s32 0, %v1371
      %v1373 = vrot.slane %v1242, %v1372
      %v1374 = vlaneseq
      %v1375 = vshrl.u32 %v1374, 7
      %v1376 = vsub.s32 0, %v1375
      %v1377 = vrot.slane %v1250, %v1376
      %v1378 = vlaneseq
      %v1379 = vshrl.u32 %v1378, 7
      %v1380 = vsub.s32 0, %v1379
      %v1381 = vrot.slane %v1252, %v1380
      %v1382 = vlaneseq
      %v1383 = vshrl.u32 %v1382, 7
      %v1384 = vsub.s32 0, %v1383
      %v1385 = vrot.slane %v1235, %v1384
      %v1386 = vlaneseq
      %v1387 = vshrl.u32 %v1386, 7
      %v1388 = vsub.s32 0, %v1387
      %v1389 = vrot.slane %v1249, %v1388
      %v1390 = vlaneseq
      %v1391 = vshrl.u32 %v1390, 7
      %v1392 = vsub.s32 0, %v1391
      %v1393 = vrot.slane %v1251, %v1392
      %v1394 = vlaneseq
      %v1395 = vshrl.u32 %v1394, 7
      %v1396 = vsub.s32 0, %v1395
      %v1397 = vrot.slane %v1253, %v1396
      %v1398 = vlaneseq
      %v1399 = vshrl.u32 %v1398, 7
      %v1400 = vsub.s32 0, %v1399
      %v1401 = vrot.slane %v1277, %v1400
      %v1402 = vlaneseq
      %v1403 = vshrl.u32 %v1402, 7
      %v1404 = vsub.s32 0, %v1403
      %v1405 = vrot.slane %v1291, %v1404
      %v1406 = vlaneseq
      %v1407 = vshrl.u32 %v1406, 7
      %v1408 = vsub.s32 0, %v1407
      %v1409 = vrot.slane %v1299, %v1408
      %v1410 = vlaneseq
      %v1411 = vshrl.u32 %v1410, 7
      %v1412 = vsub.s32 0, %v1411
      %v1413 = vrot.slane %v1301, %v1412
      %v1414 = vlaneseq
      %v1415 = vshrl.u32 %v1414, 7
      %v1416 = vsub.s32 0, %v1415
      %v1417 = vrot.slane %v1284, %v1416
      %v1418 = vlaneseq
      %v1419 = vshrl.u32 %v1418, 7
      %v1420 = vsub.s32 0, %v1419
      %v1421 = vrot.slane %v1298, %v1420
      %v1422 = vlaneseq
      %v1423 = vshrl.u32 %v1422, 7
      %v1424 = vsub.s32 0, %v1423
      %v1425 = vrot.slane %v1300, %v1424
      %v1426 = vlaneseq
      %v1427 = vshrl.u32 %v1426, 7
      %v1428 = vsub.s32 0, %v1427
      %v1429 = vrot.slane %v1302, %v1428
      %v1430 = vlaneseq
      %v1431 = vshrl.u32 %v1430, 7
      %v1432 = vsub.s32 0, %v1431
      %v1433 = vrot.slane %v1326, %v1432
      %v1434 = vlaneseq
      %v1435 = vshrl.u32 %v1434, 7
      %v1436 = vsub.s32 0, %v1435
      %v1437 = vrot.slane %v1340, %v1436
      %v1438 = vlaneseq
      %v1439 = vshrl.u32 %v1438, 7
      %v1440 = vsub.s32 0, %v1439
      %v1441 = vrot.slane %v1348, %v1440
      %v1442 = vlaneseq
      %v1443 = vshrl.u32 %v1442, 7
      %v1444 = vsub.s32 0, %v1443
      %v1445 = vrot.slane %v1350, %v1444
      %v1446 = vlaneseq
      %v1447 = vshrl.u32 %v1446, 7
      %v1448 = vsub.s32 0, %v1447
      %v1449 = vrot.slane %v1333, %v1448
      %v1450 = vlaneseq
      %v1451 = vshrl.u32 %v1450, 7
      %v1452 = vsub.s32 0, %v1451
      %v1453 = vrot.slane %v1347, %v1452
      %v1454 = vlaneseq
      %v1455 = vshrl.u32 %v1454, 7
      %v1456 = vsub.s32 0, %v1455
      %v1457 = vrot.slane %v1349, %v1456
      %v1458 = vlaneseq
      %v1459 = vshrl.u32 %v1458, 7
      %v1460 = vsub.s32 0, %v1459
      %v1461 = vrot.slane %v1351, %v1460
      %v1462 = vlaneseq
      %v1463 = vshrl.u32 %v1462, 7
      %v1464 = vsub.s32 0, %v1463
      %v1465 = vrot.slane %v1365, %v1464
      %v1491 = vmul.f32 %v1027, %v1369
      %v1492 = vmul.f32 %v1034, %v1373
      %v1493 = vmul.f32 %v1041, %v1377
      %v1494 = vmul.f32 %v1048, %v1381
      %v1495 = vmul.f32 %v1055, %v1385
      %v1496 = vmul.f32 %v1062, %v1389
      %v1497 = vmul.f32 %v1069, %v1393
      %v1498 = vmul.f32 %v1076, %v1397
      %v1499 = vmul.f32 %v1083, %v1401
      %v1500 = vmul.f32 %v1090, %v1405
      %v1501 = vmul.f32 %v1097, %v1409
      %v1502 = vmul.f32 %v1104, %v1413
      %v1503 = vmul.f32 %v1111, %v1417
      %v1504 = vmul.f32 %v1118, %v1421
      %v1505 = vmul.f32 %v1125, %v1425
      %v1506 = vmul.f32 %v1132, %v1429
      %v1507 = vmul.f32 %v1139, %v1433
      %v1508 = vmul.f32 %v1146, %v1437
      %v1509 = vmul.f32 %v1153, %v1441
      %v1510 = vmul.f32 %v1160, %v1445
      %v1511 = vmul.f32 %v1167, %v1449
      %v1512 = vmul.f32 %v1174, %v1453
      %v1513 = vmul.f32 %v1181, %v1457
      %v1514 = vmul.f32 %v1188, %v1461
      %v1515 = vmul.f32 %v1195, %v1465
      %v1516 = vadd.f32 %v991, %v1491
      %v1517 = vadd.f32 %v992, %v1492
      %v1518 = vadd.f32 %v993, %v1493
      %v1519 = vadd.f32 %v994, %v1494
      %v1520 = vadd.f32 %v995, %v1495
      %v1521 = vadd.f32 %v996, %v1496
      %v1522 = vadd.f32 %v997, %v1497
      %v1523 = vadd.f32 %v998, %v1498
      %v1524 = vadd.f32 %v999, %v1499
      %v1525 = vadd.f32 %v1000, %v1500
      %v1526 = vadd.f32 %v1001, %v1501
      %v1527 = vadd.f32 %v1002, %v1502
      %v1528 = vadd.f32 %v1003, %v1503
      %v1529 = vadd.f32 %v1004, %v1504
      %v1530 = vadd.f32 %v1005, %v1505
      %v1531 = vadd.f32 %v1006, %v1506
      %v1532 = vadd.f32 %v1007, %v1507
      %v1533 = vadd.f32 %v1008, %v1508
      %v1534 = vadd.f32 %v1009, %v1509
      %v1535 = vadd.f32 %v1010, %v1510
      %v1536 = vadd.f32 %v1011, %v1511
      %v1537 = vadd.f32 %v1012, %v1512
      %v1538 = vadd.f32 %v1013, %v1513
      %v1539 = vadd.f32 %v1014, %v1514
      %v1540 = vadd.f32 %v1015, %v1515
      %s1541 = scalar_lea.vmem %s192, 64
      %v1542 = vld [vmem:[%s1541] sm:$0xff]
      %v1543 = vld [vmem:[%s1541 + $0x8] sm:$0xff]
      %v1544 = vld [vmem:[%s1541 + $0x10] sm:$0xff]
      %v1545 = vld [vmem:[%s1541 + $0x18] sm:$0x1]
      %v1546 = vlaneseq
      %v1547 = vshrl.u32 %v1546, 7
      %v1548 = vsub.s32 0, %v1547
      %v1549 = vrot.slane %v1542, %v1548
      %1551 = vbcast.lane.b32.xlu0 %v1549, 256
      %v1552 = vpop.permute.xlu0 %1551
      %v1553 = vlaneseq
      %v1554 = vshrl.u32 %v1553, 7
      %v1555 = vsub.s32 1, %v1554
      %v1556 = vrot.slane %v1542, %v1555
      %1558 = vbcast.lane.b32.xlu0 %v1556, 256
      %v1559 = vpop.permute.xlu0 %1558
      %v1560 = vlaneseq
      %v1561 = vshrl.u32 %v1560, 7
      %v1562 = vsub.s32 2, %v1561
      %v1563 = vrot.slane %v1542, %v1562
      %1565 = vbcast.lane.b32.xlu0 %v1563, 256
      %v1566 = vpop.permute.xlu0 %1565
      %v1567 = vlaneseq
      %v1568 = vshrl.u32 %v1567, 7
      %v1569 = vsub.s32 3, %v1568
      %v1570 = vrot.slane %v1542, %v1569
      %1572 = vbcast.lane.b32.xlu0 %v1570, 256
      %v1573 = vpop.permute.xlu0 %1572
      %v1574 = vlaneseq
      %v1575 = vshrl.u32 %v1574, 7
      %v1576 = vsub.s32 4, %v1575
      %v1577 = vrot.slane %v1542, %v1576
      %1579 = vbcast.lane.b32.xlu0 %v1577, 256
      %v1580 = vpop.permute.xlu0 %1579
      %v1581 = vlaneseq
      %v1582 = vshrl.u32 %v1581, 7
      %v1583 = vsub.s32 5, %v1582
      %v1584 = vrot.slane %v1542, %v1583
      %1586 = vbcast.lane.b32.xlu0 %v1584, 256
      %v1587 = vpop.permute.xlu0 %1586
      %v1588 = vlaneseq
      %v1589 = vshrl.u32 %v1588, 7
      %v1590 = vsub.s32 6, %v1589
      %v1591 = vrot.slane %v1542, %v1590
      %1593 = vbcast.lane.b32.xlu0 %v1591, 256
      %v1594 = vpop.permute.xlu0 %1593
      %v1595 = vlaneseq
      %v1596 = vshrl.u32 %v1595, 7
      %v1597 = vsub.s32 7, %v1596
      %v1598 = vrot.slane %v1542, %v1597
      %1600 = vbcast.lane.b32.xlu0 %v1598, 256
      %v1601 = vpop.permute.xlu0 %1600
      %v1602 = vlaneseq
      %v1603 = vshrl.u32 %v1602, 7
      %v1604 = vsub.s32 0, %v1603
      %v1605 = vrot.slane %v1543, %v1604
      %1607 = vbcast.lane.b32.xlu0 %v1605, 256
      %v1608 = vpop.permute.xlu0 %1607
      %v1609 = vlaneseq
      %v1610 = vshrl.u32 %v1609, 7
      %v1611 = vsub.s32 1, %v1610
      %v1612 = vrot.slane %v1543, %v1611
      %1614 = vbcast.lane.b32.xlu0 %v1612, 256
      %v1615 = vpop.permute.xlu0 %1614
      %v1616 = vlaneseq
      %v1617 = vshrl.u32 %v1616, 7
      %v1618 = vsub.s32 2, %v1617
      %v1619 = vrot.slane %v1543, %v1618
      %1621 = vbcast.lane.b32.xlu0 %v1619, 256
      %v1622 = vpop.permute.xlu0 %1621
      %v1623 = vlaneseq
      %v1624 = vshrl.u32 %v1623, 7
      %v1625 = vsub.s32 3, %v1624
      %v1626 = vrot.slane %v1543, %v1625
      %1628 = vbcast.lane.b32.xlu0 %v1626, 256
      %v1629 = vpop.permute.xlu0 %1628
      %v1630 = vlaneseq
      %v1631 = vshrl.u32 %v1630, 7
      %v1632 = vsub.s32 4, %v1631
      %v1633 = vrot.slane %v1543, %v1632
      %1635 = vbcast.lane.b32.xlu0 %v1633, 256
      %v1636 = vpop.permute.xlu0 %1635
      %v1637 = vlaneseq
      %v1638 = vshrl.u32 %v1637, 7
      %v1639 = vsub.s32 5, %v1638
      %v1640 = vrot.slane %v1543, %v1639
      %1642 = vbcast.lane.b32.xlu0 %v1640, 256
      %v1643 = vpop.permute.xlu0 %1642
      %v1644 = vlaneseq
      %v1645 = vshrl.u32 %v1644, 7
      %v1646 = vsub.s32 6, %v1645
      %v1647 = vrot.slane %v1543, %v1646
      %1649 = vbcast.lane.b32.xlu0 %v1647, 256
      %v1650 = vpop.permute.xlu0 %1649
      %v1651 = vlaneseq
      %v1652 = vshrl.u32 %v1651, 7
      %v1653 = vsub.s32 7, %v1652
      %v1654 = vrot.slane %v1543, %v1653
      %1656 = vbcast.lane.b32.xlu0 %v1654, 256
      %v1657 = vpop.permute.xlu0 %1656
      %v1658 = vlaneseq
      %v1659 = vshrl.u32 %v1658, 7
      %v1660 = vsub.s32 0, %v1659
      %v1661 = vrot.slane %v1544, %v1660
      %1663 = vbcast.lane.b32.xlu0 %v1661, 256
      %v1664 = vpop.permute.xlu0 %1663
      %v1665 = vlaneseq
      %v1666 = vshrl.u32 %v1665, 7
      %v1667 = vsub.s32 1, %v1666
      %v1668 = vrot.slane %v1544, %v1667
      %1670 = vbcast.lane.b32.xlu0 %v1668, 256
      %v1671 = vpop.permute.xlu0 %1670
      %v1672 = vlaneseq
      %v1673 = vshrl.u32 %v1672, 7
      %v1674 = vsub.s32 2, %v1673
      %v1675 = vrot.slane %v1544, %v1674
      %1677 = vbcast.lane.b32.xlu0 %v1675, 256
      %v1678 = vpop.permute.xlu0 %1677
      %v1679 = vlaneseq
      %v1680 = vshrl.u32 %v1679, 7
      %v1681 = vsub.s32 3, %v1680
      %v1682 = vrot.slane %v1544, %v1681
      %1684 = vbcast.lane.b32.xlu0 %v1682, 256
      %v1685 = vpop.permute.xlu0 %1684
      %v1686 = vlaneseq
      %v1687 = vshrl.u32 %v1686, 7
      %v1688 = vsub.s32 4, %v1687
      %v1689 = vrot.slane %v1544, %v1688
      %1691 = vbcast.lane.b32.xlu0 %v1689, 256
      %v1692 = vpop.permute.xlu0 %1691
      %v1693 = vlaneseq
      %v1694 = vshrl.u32 %v1693, 7
      %v1695 = vsub.s32 5, %v1694
      %v1696 = vrot.slane %v1544, %v1695
      %1698 = vbcast.lane.b32.xlu0 %v1696, 256
      %v1699 = vpop.permute.xlu0 %1698
      %v1700 = vlaneseq
      %v1701 = vshrl.u32 %v1700, 7
      %v1702 = vsub.s32 6, %v1701
      %v1703 = vrot.slane %v1544, %v1702
      %1705 = vbcast.lane.b32.xlu0 %v1703, 256
      %v1706 = vpop.permute.xlu0 %1705
      %v1707 = vlaneseq
      %v1708 = vshrl.u32 %v1707, 7
      %v1709 = vsub.s32 7, %v1708
      %v1710 = vrot.slane %v1544, %v1709
      %1712 = vbcast.lane.b32.xlu0 %v1710, 256
      %v1713 = vpop.permute.xlu0 %1712
      %v1714 = vlaneseq
      %v1715 = vshrl.u32 %v1714, 7
      %v1716 = vsub.s32 0, %v1715
      %v1717 = vrot.slane %v1545, %v1716
      %1719 = vbcast.lane.b32.xlu0 %v1717, 256
      %v1720 = vpop.permute.xlu0 %1719
      %s1721 = scalar_lea.vmem %s1, 64
      %v1722 = vld [vmem:[%s1721] sm:$0xff]
      %v1723 = vld [vmem:[%s1721 + $0x8] sm:$0xff]
      %v1724 = vld [vmem:[%s1721 + $0x10] sm:$0xff]
      %v1725 = vld [vmem:[%s1721 + $0x18] sm:$0x1]
      %v1730 = vcombine.high %v1722, %v1722
      %v1732 = vunpack.c.l.s4 1966171168
      %v1733 = vunpack.c.0.s8 %v1732
      %v1734 = vlaneseq
      %v1735 = vshrl.u32 %v1734, 7
      %v1736 = vsub.s32 %v1733, %v1735
      %v1737 = vrot.slane %v1722, %v1736
      %v1739 = vunpack.c.l.s4 1966171168
      %v1740 = vunpack.c.0.s8 %v1739
      %v1741 = vlaneseq
      %v1742 = vshrl.u32 %v1741, 7
      %v1743 = vsub.s32 %v1740, %v1742
      %v1744 = vrot.slane %v1730, %v1743
      %v1745 = vcombine.high %v1737, %v1737
      %v1746 = vcombine.high %v1744, %v1744
      %v1748 = vunpack.c.l.s4 1966171168
      %v1749 = vunpack.c.0.s8 %v1748
      %v1750 = vlaneseq
      %v1751 = vshrl.u32 %v1750, 7
      %v1752 = vsub.s32 %v1749, %v1751
      %v1753 = vrot.slane %v1737, %v1752
      %v1755 = vunpack.c.l.s4 1966171168
      %v1756 = vunpack.c.0.s8 %v1755
      %v1757 = vlaneseq
      %v1758 = vshrl.u32 %v1757, 7
      %v1759 = vsub.s32 %v1756, %v1758
      %v1760 = vrot.slane %v1744, %v1759
      %v1762 = vunpack.c.l.s4 1966171168
      %v1763 = vunpack.c.0.s8 %v1762
      %v1764 = vlaneseq
      %v1765 = vshrl.u32 %v1764, 7
      %v1766 = vsub.s32 %v1763, %v1765
      %v1767 = vrot.slane %v1745, %v1766
      %v1769 = vunpack.c.l.s4 1966171168
      %v1770 = vunpack.c.0.s8 %v1769
      %v1771 = vlaneseq
      %v1772 = vshrl.u32 %v1771, 7
      %v1773 = vsub.s32 %v1770, %v1772
      %v1774 = vrot.slane %v1746, %v1773
      %v1775 = vcombine.high %v1753, %v1753
      %v1776 = vcombine.high %v1760, %v1760
      %v1777 = vcombine.high %v1767, %v1767
      %v1778 = vcombine.high %v1774, %v1774
      %v1779 = vcombine.high %v1723, %v1723
      %v1781 = vunpack.c.l.s4 1966171168
      %v1782 = vunpack.c.0.s8 %v1781
      %v1783 = vlaneseq
      %v1784 = vshrl.u32 %v1783, 7
      %v1785 = vsub.s32 %v1782, %v1784
      %v1786 = vrot.slane %v1723, %v1785
      %v1788 = vunpack.c.l.s4 1966171168
      %v1789 = vunpack.c.0.s8 %v1788
      %v1790 = vlaneseq
      %v1791 = vshrl.u32 %v1790, 7
      %v1792 = vsub.s32 %v1789, %v1791
      %v1793 = vrot.slane %v1779, %v1792
      %v1794 = vcombine.high %v1786, %v1786
      %v1795 = vcombine.high %v1793, %v1793
      %v1797 = vunpack.c.l.s4 1966171168
      %v1798 = vunpack.c.0.s8 %v1797
      %v1799 = vlaneseq
      %v1800 = vshrl.u32 %v1799, 7
      %v1801 = vsub.s32 %v1798, %v1800
      %v1802 = vrot.slane %v1786, %v1801
      %v1804 = vunpack.c.l.s4 1966171168
      %v1805 = vunpack.c.0.s8 %v1804
      %v1806 = vlaneseq
      %v1807 = vshrl.u32 %v1806, 7
      %v1808 = vsub.s32 %v1805, %v1807
      %v1809 = vrot.slane %v1793, %v1808
      %v1811 = vunpack.c.l.s4 1966171168
      %v1812 = vunpack.c.0.s8 %v1811
      %v1813 = vlaneseq
      %v1814 = vshrl.u32 %v1813, 7
      %v1815 = vsub.s32 %v1812, %v1814
      %v1816 = vrot.slane %v1794, %v1815
      %v1818 = vunpack.c.l.s4 1966171168
      %v1819 = vunpack.c.0.s8 %v1818
      %v1820 = vlaneseq
      %v1821 = vshrl.u32 %v1820, 7
      %v1822 = vsub.s32 %v1819, %v1821
      %v1823 = vrot.slane %v1795, %v1822
      %v1824 = vcombine.high %v1802, %v1802
      %v1825 = vcombine.high %v1809, %v1809
      %v1826 = vcombine.high %v1816, %v1816
      %v1827 = vcombine.high %v1823, %v1823
      %v1828 = vcombine.high %v1724, %v1724
      %v1830 = vunpack.c.l.s4 1966171168
      %v1831 = vunpack.c.0.s8 %v1830
      %v1832 = vlaneseq
      %v1833 = vshrl.u32 %v1832, 7
      %v1834 = vsub.s32 %v1831, %v1833
      %v1835 = vrot.slane %v1724, %v1834
      %v1837 = vunpack.c.l.s4 1966171168
      %v1838 = vunpack.c.0.s8 %v1837
      %v1839 = vlaneseq
      %v1840 = vshrl.u32 %v1839, 7
      %v1841 = vsub.s32 %v1838, %v1840
      %v1842 = vrot.slane %v1828, %v1841
      %v1843 = vcombine.high %v1835, %v1835
      %v1844 = vcombine.high %v1842, %v1842
      %v1846 = vunpack.c.l.s4 1966171168
      %v1847 = vunpack.c.0.s8 %v1846
      %v1848 = vlaneseq
      %v1849 = vshrl.u32 %v1848, 7
      %v1850 = vsub.s32 %v1847, %v1849
      %v1851 = vrot.slane %v1835, %v1850
      %v1853 = vunpack.c.l.s4 1966171168
      %v1854 = vunpack.c.0.s8 %v1853
      %v1855 = vlaneseq
      %v1856 = vshrl.u32 %v1855, 7
      %v1857 = vsub.s32 %v1854, %v1856
      %v1858 = vrot.slane %v1842, %v1857
      %v1860 = vunpack.c.l.s4 1966171168
      %v1861 = vunpack.c.0.s8 %v1860
      %v1862 = vlaneseq
      %v1863 = vshrl.u32 %v1862, 7
      %v1864 = vsub.s32 %v1861, %v1863
      %v1865 = vrot.slane %v1843, %v1864
      %v1867 = vunpack.c.l.s4 1966171168
      %v1868 = vunpack.c.0.s8 %v1867
      %v1869 = vlaneseq
      %v1870 = vshrl.u32 %v1869, 7
      %v1871 = vsub.s32 %v1868, %v1870
      %v1872 = vrot.slane %v1844, %v1871
      %v1873 = vcombine.high %v1851, %v1851
      %v1874 = vcombine.high %v1858, %v1858
      %v1875 = vcombine.high %v1865, %v1865
      %v1876 = vcombine.high %v1872, %v1872
      %v1878 = vunpack.c.l.s4 1966171168
      %v1879 = vunpack.c.0.s8 %v1878
      %v1880 = vlaneseq
      %v1881 = vshrl.u32 %v1880, 7
      %v1882 = vsub.s32 %v1879, %v1881
      %v1883 = vrot.slane %v1725, %v1882
      %v1885 = vunpack.c.l.s4 1966171168
      %v1886 = vunpack.c.0.s8 %v1885
      %v1887 = vlaneseq
      %v1888 = vshrl.u32 %v1887, 7
      %v1889 = vsub.s32 %v1886, %v1888
      %v1890 = vrot.slane %v1883, %v1889
      %v1891 = vlaneseq
      %v1892 = vshrl.u32 %v1891, 7
      %v1893 = vsub.s32 0, %v1892
      %v1894 = vrot.slane %v1753, %v1893
      %v1895 = vlaneseq
      %v1896 = vshrl.u32 %v1895, 7
      %v1897 = vsub.s32 0, %v1896
      %v1898 = vrot.slane %v1767, %v1897
      %v1899 = vlaneseq
      %v1900 = vshrl.u32 %v1899, 7
      %v1901 = vsub.s32 0, %v1900
      %v1902 = vrot.slane %v1775, %v1901
      %v1903 = vlaneseq
      %v1904 = vshrl.u32 %v1903, 7
      %v1905 = vsub.s32 0, %v1904
      %v1906 = vrot.slane %v1777, %v1905
      %v1907 = vlaneseq
      %v1908 = vshrl.u32 %v1907, 7
      %v1909 = vsub.s32 0, %v1908
      %v1910 = vrot.slane %v1760, %v1909
      %v1911 = vlaneseq
      %v1912 = vshrl.u32 %v1911, 7
      %v1913 = vsub.s32 0, %v1912
      %v1914 = vrot.slane %v1774, %v1913
      %v1915 = vlaneseq
      %v1916 = vshrl.u32 %v1915, 7
      %v1917 = vsub.s32 0, %v1916
      %v1918 = vrot.slane %v1776, %v1917
      %v1919 = vlaneseq
      %v1920 = vshrl.u32 %v1919, 7
      %v1921 = vsub.s32 0, %v1920
      %v1922 = vrot.slane %v1778, %v1921
      %v1923 = vlaneseq
      %v1924 = vshrl.u32 %v1923, 7
      %v1925 = vsub.s32 0, %v1924
      %v1926 = vrot.slane %v1802, %v1925
      %v1927 = vlaneseq
      %v1928 = vshrl.u32 %v1927, 7
      %v1929 = vsub.s32 0, %v1928
      %v1930 = vrot.slane %v1816, %v1929
      %v1931 = vlaneseq
      %v1932 = vshrl.u32 %v1931, 7
      %v1933 = vsub.s32 0, %v1932
      %v1934 = vrot.slane %v1824, %v1933
      %v1935 = vlaneseq
      %v1936 = vshrl.u32 %v1935, 7
      %v1937 = vsub.s32 0, %v1936
      %v1938 = vrot.slane %v1826, %v1937
      %v1939 = vlaneseq
      %v1940 = vshrl.u32 %v1939, 7
      %v1941 = vsub.s32 0, %v1940
      %v1942 = vrot.slane %v1809, %v1941
      %v1943 = vlaneseq
      %v1944 = vshrl.u32 %v1943, 7
      %v1945 = vsub.s32 0, %v1944
      %v1946 = vrot.slane %v1823, %v1945
      %v1947 = vlaneseq
      %v1948 = vshrl.u32 %v1947, 7
      %v1949 = vsub.s32 0, %v1948
      %v1950 = vrot.slane %v1825, %v1949
      %v1951 = vlaneseq
      %v1952 = vshrl.u32 %v1951, 7
      %v1953 = vsub.s32 0, %v1952
      %v1954 = vrot.slane %v1827, %v1953
      %v1955 = vlaneseq
      %v1956 = vshrl.u32 %v1955, 7
      %v1957 = vsub.s32 0, %v1956
      %v1958 = vrot.slane %v1851, %v1957
      %v1959 = vlaneseq
      %v1960 = vshrl.u32 %v1959, 7
      %v1961 = vsub.s32 0, %v1960
      %v1962 = vrot.slane %v1865, %v1961
      %v1963 = vlaneseq
      %v1964 = vshrl.u32 %v1963, 7
      %v1965 = vsub.s32 0, %v1964
      %v1966 = vrot.slane %v1873, %v1965
      %v1967 = vlaneseq
      %v1968 = vshrl.u32 %v1967, 7
      %v1969 = vsub.s32 0, %v1968
      %v1970 = vrot.slane %v1875, %v1969
      %v1971 = vlaneseq
      %v1972 = vshrl.u32 %v1971, 7
      %v1973 = vsub.s32 0, %v1972
      %v1974 = vrot.slane %v1858, %v1973
      %v1975 = vlaneseq
      %v1976 = vshrl.u32 %v1975, 7
      %v1977 = vsub.s32 0, %v1976
      %v1978 = vrot.slane %v1872, %v1977
      %v1979 = vlaneseq
      %v1980 = vshrl.u32 %v1979, 7
      %v1981 = vsub.s32 0, %v1980
      %v1982 = vrot.slane %v1874, %v1981
      %v1983 = vlaneseq
      %v1984 = vshrl.u32 %v1983, 7
      %v1985 = vsub.s32 0, %v1984
      %v1986 = vrot.slane %v1876, %v1985
      %v1987 = vlaneseq
      %v1988 = vshrl.u32 %v1987, 7
      %v1989 = vsub.s32 0, %v1988
      %v1990 = vrot.slane %v1890, %v1989
      %v2016 = vmul.f32 %v1552, %v1894
      %v2017 = vmul.f32 %v1559, %v1898
      %v2018 = vmul.f32 %v1566, %v1902
      %v2019 = vmul.f32 %v1573, %v1906
      %v2020 = vmul.f32 %v1580, %v1910
      %v2021 = vmul.f32 %v1587, %v1914
      %v2022 = vmul.f32 %v1594, %v1918
      %v2023 = vmul.f32 %v1601, %v1922
      %v2024 = vmul.f32 %v1608, %v1926
      %v2025 = vmul.f32 %v1615, %v1930
      %v2026 = vmul.f32 %v1622, %v1934
      %v2027 = vmul.f32 %v1629, %v1938
      %v2028 = vmul.f32 %v1636, %v1942
      %v2029 = vmul.f32 %v1643, %v1946
      %v2030 = vmul.f32 %v1650, %v1950
      %v2031 = vmul.f32 %v1657, %v1954
      %v2032 = vmul.f32 %v1664, %v1958
      %v2033 = vmul.f32 %v1671, %v1962
      %v2034 = vmul.f32 %v1678, %v1966
      %v2035 = vmul.f32 %v1685, %v1970
      %v2036 = vmul.f32 %v1692, %v1974
      %v2037 = vmul.f32 %v1699, %v1978
      %v2038 = vmul.f32 %v1706, %v1982
      %v2039 = vmul.f32 %v1713, %v1986
      %v2040 = vmul.f32 %v1720, %v1990
      %v2041 = vadd.f32 %v1516, %v2016
      %v2042 = vadd.f32 %v1517, %v2017
      %v2043 = vadd.f32 %v1518, %v2018
      %v2044 = vadd.f32 %v1519, %v2019
      %v2045 = vadd.f32 %v1520, %v2020
      %v2046 = vadd.f32 %v1521, %v2021
      %v2047 = vadd.f32 %v1522, %v2022
      %v2048 = vadd.f32 %v1523, %v2023
      %v2049 = vadd.f32 %v1524, %v2024
      %v2050 = vadd.f32 %v1525, %v2025
      %v2051 = vadd.f32 %v1526, %v2026
      %v2052 = vadd.f32 %v1527, %v2027
      %v2053 = vadd.f32 %v1528, %v2028
      %v2054 = vadd.f32 %v1529, %v2029
      %v2055 = vadd.f32 %v1530, %v2030
      %v2056 = vadd.f32 %v1531, %v2031
      %v2057 = vadd.f32 %v1532, %v2032
      %v2058 = vadd.f32 %v1533, %v2033
      %v2059 = vadd.f32 %v1534, %v2034
      %v2060 = vadd.f32 %v1535, %v2035
      %v2061 = vadd.f32 %v1536, %v2036
      %v2062 = vadd.f32 %v1537, %v2037
      %v2063 = vadd.f32 %v1538, %v2038
      %v2064 = vadd.f32 %v1539, %v2039
      %v2065 = vadd.f32 %v1540, %v2040
      %v2066 = vmax.f32 %v2041, 0.0
      %v2067 = vmax.f32 %v2042, 0.0
      %v2068 = vmax.f32 %v2043, 0.0
      %v2069 = vmax.f32 %v2044, 0.0
      %v2070 = vmax.f32 %v2045, 0.0
      %v2071 = vmax.f32 %v2046, 0.0
      %v2072 = vmax.f32 %v2047, 0.0
      %v2073 = vmax.f32 %v2048, 0.0
      %v2074 = vmax.f32 %v2049, 0.0
      %v2075 = vmax.f32 %v2050, 0.0
      %v2076 = vmax.f32 %v2051, 0.0
      %v2077 = vmax.f32 %v2052, 0.0
      %v2078 = vmax.f32 %v2053, 0.0
      %v2079 = vmax.f32 %v2054, 0.0
      %v2080 = vmax.f32 %v2055, 0.0
      %v2081 = vmax.f32 %v2056, 0.0
      %v2082 = vmax.f32 %v2057, 0.0
      %v2083 = vmax.f32 %v2058, 0.0
      %v2084 = vmax.f32 %v2059, 0.0
      %v2085 = vmax.f32 %v2060, 0.0
      %v2086 = vmax.f32 %v2061, 0.0
      %v2087 = vmax.f32 %v2062, 0.0
      %v2088 = vmax.f32 %v2063, 0.0
      %v2089 = vmax.f32 %v2064, 0.0
      %v2090 = vmax.f32 %v2065, 0.0
      %v2091 = vpack.c.bf16 %v2067, %v2066
      %v2092 = vpack.c.bf16 %v2069, %v2068
      %v2093 = vpack.c.bf16 %v2071, %v2070
      %v2094 = vpack.c.bf16 %v2073, %v2072
      %v2095 = vpack.c.bf16 %v2075, %v2074
      %v2096 = vpack.c.bf16 %v2077, %v2076
      %v2097 = vpack.c.bf16 %v2079, %v2078
      %v2098 = vpack.c.bf16 %v2081, %v2080
      %v2099 = vpack.c.bf16 %v2083, %v2082
      %v2100 = vpack.c.bf16 %v2085, %v2084
      %v2101 = vpack.c.bf16 %v2087, %v2086
      %v2102 = vpack.c.bf16 %v2089, %v2088
      %v2103 = vpack.c.bf16 %v2090, %v2090
      %v2104 = vld [vmem:[%s3] sm:$0xf]
      %v2105 = vld [vmem:[%s3 + $0x4] sm:$0xf]
      %v2106 = vld [vmem:[%s3 + $0x8] sm:$0xf]
      %v2107 = vld [vmem:[%s3 + $0xc] sm:$0xf]
      %v2108 = vld [vmem:[%s3 + $0x10] sm:$0xf]
      %v2109 = vld [vmem:[%s3 + $0x14] sm:$0xf]
      %v2110 = vld [vmem:[%s3 + $0x18] sm:$0xf]
      %v2111 = vld [vmem:[%s3 + $0x1c] sm:$0xf]
      %v2120 = vunpack.c.l.b16 %v2104
      %v2121 = vunpack.c.l.b16 %v2105
      %v2122 = vunpack.c.l.b16 %v2106
      %v2123 = vunpack.c.l.b16 %v2107
      %v2124 = vunpack.c.l.b16 %v2108
      %v2125 = vunpack.c.l.b16 %v2109
      %v2126 = vunpack.c.l.b16 %v2110
      %v2127 = vunpack.c.l.b16 %v2111
      %v2128 = vpack.c.b16 %v2121, %v2120
      %v2129 = vpack.c.b16 %v2123, %v2122
      %v2130 = vpack.c.b16 %v2125, %v2124
      %v2131 = vpack.c.b16 %v2127, %v2126
      %vm2136 = vcmask 523264
      %v2138 = vsel %vm2136, %v2091, 0
      %v2141 = vsel %vm2136, %v2092, 0
      %v2144 = vsel %vm2136, %v2093, 0
      %v2147 = vsel %vm2136, %v2094, 0
      %v2150 = vsel %vm2136, %v2095, 0
      %v2153 = vsel %vm2136, %v2096, 0
      %v2156 = vsel %vm2136, %v2097, 0
      %v2159 = vsel %vm2136, %v2098, 0
      %v2162 = vsel %vm2136, %v2099, 0
      %v2165 = vsel %vm2136, %v2100, 0
      %v2168 = vsel %vm2136, %v2101, 0
      %v2171 = vsel %vm2136, %v2102, 0
      %v2174 = vsel %vm2136, %v2103, 0
      %2176 = vmatprep.subr.bf16.mxu0 0
      %2177 = vmatpush1.bf16.msra.mxu0 0
      %2178 = vmatprep.subr.bf16.mxu0 0
      %2179 = vmatpush1.bf16.msra.mxu0 0
      %2180 = vmatprep.subr.bf16.mxu0 0
      %2181 = vmatpush1.bf16.msra.mxu0 0
      %2182 = vmatprep.subr.bf16.mxu0 0
      %2183 = vmatpush1.bf16.msra.mxu0 0
      %2184 = vmatprep.subr.bf16.mxu0 0
      %2185 = vmatpush1.bf16.msra.mxu0 %v2131
      %2186 = vmatprep.subr.bf16.mxu0 0
      %2187 = vmatpush1.bf16.msra.mxu0 %v2130
      %2188 = vmatprep.subr.bf16.mxu0 0
      %2189 = vmatpush1.bf16.msra.mxu0 %v2129
      %2190 = vmatprep.subr.bf16.mxu0 0
      %2191 = vmatpush1.bf16.msra.mxu0 %v2128
      %2192 = vmatprep.subr.bf16.mxu0 0
      %2193 = vmatpush2.bf16.msra.mxu0 0
      %2194 = vmatprep.subr.bf16.mxu0 0
      %2195 = vmatpush2.bf16.msra.mxu0 0
      %2196 = vmatprep.subr.bf16.mxu0 0
      %2197 = vmatpush2.bf16.msra.mxu0 0
      %2198 = vmatprep.subr.bf16.mxu0 0
      %2199 = vmatpush2.bf16.msra.mxu0 0
      %2200 = vmatprep.subr.bf16.mxu0 0
      %2201 = vmatpush2.bf16.msra.mxu0 0
      %2202 = vmatprep.subr.bf16.mxu0 0
      %2203 = vmatpush2.bf16.msra.mxu0 0
      %2204 = vmatprep.subr.bf16.mxu0 0
      %2205 = vmatpush2.bf16.msra.mxu0 0
      %2206 = vmatprep.subr.bf16.mxu0 0
      %2207 = vmatpush2.bf16.msra.mxu0 0
      %2208 = vmatprep.mubr.bf16.mxu0 0
      %2209 = vmatmul.mubr.bf16.gmra.mxu0 %v2138
      %v2210 = vpop.f32.mrf.mxu0
      %v2211 = vadd.f32 0.0, %v2210
      %v2212 = vpop.f32.mrf.mxu0
      %v2213 = vpop.f32.mrf.mxu0
      %v2214 = vadd.f32 0.0, %v2213
      %v2215 = vpop.f32.mrf.mxu0
      %2216 = vmatprep.mubr.bf16.mxu0 0
      %2217 = vmatmul.mubr.bf16.gmra.mxu0 %v2141
      %v2218 = vpop.f32.mrf.mxu0
      %v2219 = vadd.f32 0.0, %v2218
      %v2220 = vpop.f32.mrf.mxu0
      %v2221 = vpop.f32.mrf.mxu0
      %v2222 = vadd.f32 0.0, %v2221
      %v2223 = vpop.f32.mrf.mxu0
      %2224 = vmatprep.mubr.bf16.mxu0 0
      %2225 = vmatmul.mubr.bf16.gmra.mxu0 %v2144
      %v2226 = vpop.f32.mrf.mxu0
      %v2227 = vadd.f32 0.0, %v2226
      %v2228 = vpop.f32.mrf.mxu0
      %v2229 = vpop.f32.mrf.mxu0
      %v2230 = vadd.f32 0.0, %v2229
      %v2231 = vpop.f32.mrf.mxu0
      %2232 = vmatprep.mubr.bf16.mxu0 0
      %2233 = vmatmul.mubr.bf16.gmra.mxu0 %v2147
      %v2234 = vpop.f32.mrf.mxu0
      %v2235 = vadd.f32 0.0, %v2234
      %v2236 = vpop.f32.mrf.mxu0
      %v2237 = vpop.f32.mrf.mxu0
      %v2238 = vadd.f32 0.0, %v2237
      %v2239 = vpop.f32.mrf.mxu0
      %2240 = vmatprep.mubr.bf16.mxu0 0
      %2241 = vmatmul.mubr.bf16.gmra.mxu0 %v2150
      %v2242 = vpop.f32.mrf.mxu0
      %v2243 = vadd.f32 0.0, %v2242
      %v2244 = vpop.f32.mrf.mxu0
      %v2245 = vpop.f32.mrf.mxu0
      %v2246 = vadd.f32 0.0, %v2245
      %v2247 = vpop.f32.mrf.mxu0
      %2248 = vmatprep.mubr.bf16.mxu0 0
      %2249 = vmatmul.mubr.bf16.gmra.mxu0 %v2153
      %v2250 = vpop.f32.mrf.mxu0
      %v2251 = vadd.f32 0.0, %v2250
      %v2252 = vpop.f32.mrf.mxu0
      %v2253 = vpop.f32.mrf.mxu0
      %v2254 = vadd.f32 0.0, %v2253
      %v2255 = vpop.f32.mrf.mxu0
      %2256 = vmatprep.mubr.bf16.mxu0 0
      %2257 = vmatmul.mubr.bf16.gmra.mxu0 %v2156
      %v2258 = vpop.f32.mrf.mxu0
      %v2259 = vadd.f32 0.0, %v2258
      %v2260 = vpop.f32.mrf.mxu0
      %v2261 = vpop.f32.mrf.mxu0
      %v2262 = vadd.f32 0.0, %v2261
      %v2263 = vpop.f32.mrf.mxu0
      %2264 = vmatprep.mubr.bf16.mxu0 0
      %2265 = vmatmul.mubr.bf16.gmra.mxu0 %v2159
      %v2266 = vpop.f32.mrf.mxu0
      %v2267 = vadd.f32 0.0, %v2266
      %v2268 = vpop.f32.mrf.mxu0
      %v2269 = vpop.f32.mrf.mxu0
      %v2270 = vadd.f32 0.0, %v2269
      %v2271 = vpop.f32.mrf.mxu0
      %2272 = vmatprep.mubr.bf16.mxu0 0
      %2273 = vmatmul.mubr.bf16.gmra.mxu0 %v2162
      %v2274 = vpop.f32.mrf.mxu0
      %v2275 = vadd.f32 0.0, %v2274
      %v2276 = vpop.f32.mrf.mxu0
      %v2277 = vpop.f32.mrf.mxu0
      %v2278 = vadd.f32 0.0, %v2277
      %v2279 = vpop.f32.mrf.mxu0
      %2280 = vmatprep.mubr.bf16.mxu0 0
      %2281 = vmatmul.mubr.bf16.gmra.mxu0 %v2165
      %v2282 = vpop.f32.mrf.mxu0
      %v2283 = vadd.f32 0.0, %v2282
      %v2284 = vpop.f32.mrf.mxu0
      %v2285 = vpop.f32.mrf.mxu0
      %v2286 = vadd.f32 0.0, %v2285
      %v2287 = vpop.f32.mrf.mxu0
      %2288 = vmatprep.mubr.bf16.mxu0 0
      %2289 = vmatmul.mubr.bf16.gmra.mxu0 %v2168
      %v2290 = vpop.f32.mrf.mxu0
      %v2291 = vadd.f32 0.0, %v2290
      %v2292 = vpop.f32.mrf.mxu0
      %v2293 = vpop.f32.mrf.mxu0
      %v2294 = vadd.f32 0.0, %v2293
      %v2295 = vpop.f32.mrf.mxu0
      %2296 = vmatprep.mubr.bf16.mxu0 0
      %2297 = vmatmul.mubr.bf16.gmra.mxu0 %v2171
      %v2298 = vpop.f32.mrf.mxu0
      %v2299 = vadd.f32 0.0, %v2298
      %v2300 = vpop.f32.mrf.mxu0
      %v2301 = vpop.f32.mrf.mxu0
      %v2302 = vadd.f32 0.0, %v2301
      %v2303 = vpop.f32.mrf.mxu0
      %2304 = vmatprep.mubr.bf16.mxu0 0
      %2305 = vmatmul.mubr.bf16.gmra.mxu0 %v2174
      %v2306 = vpop.f32.mrf.mxu0
      %v2307 = vadd.f32 0.0, %v2306
      %v2308 = vpop.f32.mrf.mxu0
      %v2309 = vpop.f32.mrf.mxu0
      %v2310 = vpop.f32.mrf.mxu0
      %2311 = vdwg.mxu0
      %v2312 = vmax.f32 %v2211, 0.0
      %v2313 = vmax.f32 %v2214, 0.0
      %v2314 = vmax.f32 %v2219, 0.0
      %v2315 = vmax.f32 %v2222, 0.0
      %v2316 = vmax.f32 %v2227, 0.0
      %v2317 = vmax.f32 %v2230, 0.0
      %v2318 = vmax.f32 %v2235, 0.0
      %v2319 = vmax.f32 %v2238, 0.0
      %v2320 = vmax.f32 %v2243, 0.0
      %v2321 = vmax.f32 %v2246, 0.0
      %v2322 = vmax.f32 %v2251, 0.0
      %v2323 = vmax.f32 %v2254, 0.0
      %v2324 = vmax.f32 %v2259, 0.0
      %v2325 = vmax.f32 %v2262, 0.0
      %v2326 = vmax.f32 %v2267, 0.0
      %v2327 = vmax.f32 %v2270, 0.0
      %v2328 = vmax.f32 %v2275, 0.0
      %v2329 = vmax.f32 %v2278, 0.0
      %v2330 = vmax.f32 %v2283, 0.0
      %v2331 = vmax.f32 %v2286, 0.0
      %v2332 = vmax.f32 %v2291, 0.0
      %v2333 = vmax.f32 %v2294, 0.0
      %v2334 = vmax.f32 %v2299, 0.0
      %v2335 = vmax.f32 %v2302, 0.0
      %v2336 = vmax.f32 %v2307, 0.0
      %2337 = vxpose.xlu0.b32.start [1/16] %v2312, 128
      %2338 = vxpose.xlu0.b32.cont [2/16] %v2313, 128
      %2339 = vxpose.xlu0.b32.cont [3/16] %v2314, 128
      %2340 = vxpose.xlu0.b32.cont [4/16] %v2315, 128
      %2341 = vxpose.xlu0.b32.cont [5/16] %v2316, 128
      %2342 = vxpose.xlu0.b32.cont [6/16] %v2317, 128
      %2343 = vxpose.xlu0.b32.cont [7/16] %v2318, 128
      %2344 = vxpose.xlu0.b32.cont [8/16] %v2319, 128
      %2345 = vxpose.xlu0.b32.cont [9/16] %v2320, 128
      %2346 = vxpose.xlu0.b32.cont [10/16] %v2321, 128
      %2347 = vxpose.xlu0.b32.cont [11/16] %v2322, 128
      %2348 = vxpose.xlu0.b32.cont [12/16] %v2323, 128
      %2349 = vxpose.xlu0.b32.cont [13/16] %v2324, 128
      %2350 = vxpose.xlu0.b32.cont [14/16] %v2325, 128
      %2351 = vxpose.xlu0.b32.cont [15/16] %v2326, 128
      %2352 = vxpose.xlu0.b32.end [16/16] %v2327, 128
      %v2353 = vpop.trf.xlu0
      %v2354 = vpop.trf.xlu0
      %v2355 = vpop.trf.xlu0
      %v2356 = vpop.trf.xlu0
      %v2357 = vpop.trf.xlu0
      %v2358 = vpop.trf.xlu0
      %v2359 = vpop.trf.xlu0
      %v2360 = vpop.trf.xlu0
      %v2361 = vpop.trf.xlu0
      %v2362 = vpop.trf.xlu0
      %v2363 = vpop.trf.xlu0
      %v2364 = vpop.trf.xlu0
      %v2365 = vpop.trf.xlu0
      %v2366 = vpop.trf.xlu0
      %v2367 = vpop.trf.xlu0
      %v2368 = vpop.trf.xlu0
      %2369 = vxpose.xlu0.b32.start [1/16] %v2328, 128
      %2370 = vxpose.xlu0.b32.cont [2/16] %v2329, 128
      %2371 = vxpose.xlu0.b32.cont [3/16] %v2330, 128
      %2372 = vxpose.xlu0.b32.cont [4/16] %v2331, 128
      %2373 = vxpose.xlu0.b32.cont [5/16] %v2332, 128
      %2374 = vxpose.xlu0.b32.cont [6/16] %v2333, 128
      %2375 = vxpose.xlu0.b32.cont [7/16] %v2334, 128
      %2376 = vxpose.xlu0.b32.cont [8/16] %v2335, 128
      %2377 = vxpose.xlu0.b32.cont [9/16] %v2336, 128
      %2378 = vxpose.xlu0.b32.cont [10/16] 0.0, 128
      %2379 = vxpose.xlu0.b32.cont [11/16] 0.0, 128
      %2380 = vxpose.xlu0.b32.cont [12/16] 0.0, 128
      %2381 = vxpose.xlu0.b32.cont [13/16] 0.0, 128
      %2382 = vxpose.xlu0.b32.cont [14/16] 0.0, 128
      %2383 = vxpose.xlu0.b32.cont [15/16] 0.0, 128
      %2384 = vxpose.xlu0.b32.end [16/16] 0.0, 128
      %v2385 = vpop.trf.xlu0
      %v2386 = vpop.trf.xlu0
      %v2387 = vpop.trf.xlu0
      %v2388 = vpop.trf.xlu0
      %v2389 = vpop.trf.xlu0
      %v2390 = vpop.trf.xlu0
      %v2391 = vpop.trf.xlu0
      %v2392 = vpop.trf.xlu0
      %v2393 = vpop.trf.xlu0
      %v2394 = vpop.trf.xlu0
      %v2395 = vpop.trf.xlu0
      %v2396 = vpop.trf.xlu0
      %v2397 = vpop.trf.xlu0
      %v2398 = vpop.trf.xlu0
      %v2399 = vpop.trf.xlu0
      %v2400 = vpop.trf.xlu0
      %2401 = vst [vmem:[%s197] sm:$0xff] %v2353
      %vm2402 = vcmask 588800
      %2403 = vst.msk [vmem:[%s197 + $0x8] sm:$0xff] %vm2402, %v2385
      %2404 = vst [vmem:[%s197 + $0x10] sm:$0xff] %v2354
      %2405 = vst.msk [vmem:[%s197 + $0x18] sm:$0xff] %vm2402, %v2386
      %2406 = vst [vmem:[%s197 + $0x20] sm:$0xff] %v2355
      %2407 = vst.msk [vmem:[%s197 + $0x28] sm:$0xff] %vm2402, %v2387
      %2408 = vst [vmem:[%s197 + $0x30] sm:$0xff] %v2356
      %2409 = vst.msk [vmem:[%s197 + $0x38] sm:$0xff] %vm2402, %v2388
      %2410 = vst [vmem:[%s197 + $0x40] sm:$0xff] %v2357
      %2411 = vst.msk [vmem:[%s197 + $0x48] sm:$0xff] %vm2402, %v2389
      %2412 = vst [vmem:[%s197 + $0x50] sm:$0xff] %v2358
      %2413 = vst.msk [vmem:[%s197 + $0x58] sm:$0xff] %vm2402, %v2390
      %2414 = vst [vmem:[%s197 + $0x60] sm:$0xff] %v2359
      %2415 = vst.msk [vmem:[%s197 + $0x68] sm:$0xff] %vm2402, %v2391
      %2416 = vst [vmem:[%s197 + $0x70] sm:$0xff] %v2360
      %2417 = vst.msk [vmem:[%s197 + $0x78] sm:$0xff] %vm2402, %v2392
      %2418 = vst [vmem:[%s197 + $0x80] sm:$0xff] %v2361
      %2419 = vst.msk [vmem:[%s197 + $0x88] sm:$0xff] %vm2402, %v2393
      %2420 = vst [vmem:[%s197 + $0x90] sm:$0xff] %v2362
      %2421 = vst.msk [vmem:[%s197 + $0x98] sm:$0xff] %vm2402, %v2394
      %2422 = vst [vmem:[%s197 + $0xa0] sm:$0xff] %v2363
      %2423 = vst.msk [vmem:[%s197 + $0xa8] sm:$0xff] %vm2402, %v2395
      %2424 = vst [vmem:[%s197 + $0xb0] sm:$0xff] %v2364
      %2425 = vst.msk [vmem:[%s197 + $0xb8] sm:$0xff] %vm2402, %v2396
      %2426 = vst [vmem:[%s197 + $0xc0] sm:$0xff] %v2365
      %2427 = vst.msk [vmem:[%s197 + $0xc8] sm:$0xff] %vm2402, %v2397
      %2428 = vst [vmem:[%s197 + $0xd0] sm:$0xff] %v2366
      %2429 = vst.msk [vmem:[%s197 + $0xd8] sm:$0xff] %vm2402, %v2398
      %2430 = vst [vmem:[%s197 + $0xe0] sm:$0xff] %v2367
      %2431 = vst.msk [vmem:[%s197 + $0xe8] sm:$0xff] %vm2402, %v2399
      %2432 = vst [vmem:[%s197 + $0xf0] sm:$0xff] %v2368
      %2433 = vst.msk [vmem:[%s197 + $0xf8] sm:$0xff] %vm2402, %v2400
      %p2434 = scmp.lt.s32.totalorder %s15, 1
      %s2435 = scalar_select %p2434, %s15, 1
      %s2436 = smul.addr %s2435, 32
      %s2437 = smul.addr %s2436, 8
      %s2438 = scalar_lea.vmem %s4, %s2437
      // Predicated region
      $region37: #{embed_forward.1} parent=35 // pred_check
        %p2439 = pneg %p122
      $region38: #{embed_forward.1} parent=35 // pred_check_branch
        %2441 = sbr.rel (%p2439) target = $region40
      $region39: #{embed_forward.1} parent=35 // pred_region
        _
      $region40: #{embed_forward.1} parent=35 // pred_fallthru
        _
    $region36: #{embed_forward.1} parent=5 // pred_fallthru
      _
    %p2442 = scmp.le.s32.totalorder 2, %s10
    // Predicated region
    $region41: #{embed_forward.1} parent=5 // pred_check
      %p2443 = pneg %p2442
    $region42: #{embed_forward.1} parent=5 // pred_check_branch
      %2445 = sbr.rel (%p2443) target = $region44
    $region43: #{embed_forward.1} parent=5 // pred_region
      %s2446 = ssub.s32 %s10, 2
      // Predicated region
      $region45: #{embed_forward.1} parent=43 // pred_check
        %p2447 = pneg %p128
      $region46: #{embed_forward.1} parent=43 // pred_check_branch
        %2449 = sbr.rel (%p2447) target = $region48
      $region47: #{embed_forward.1} parent=43 // pred_region
        %p2450 = scmp.lt.s32.totalorder %s16, 1
        %s2451 = scalar_select %p2450, %s16, 1
        %s2452 = smul.addr %s2451, 32
        %s2453 = smul.addr %s2452, 8
        %s2454 = scalar_lea.vmem %s4, %s2453
      $region48: #{embed_forward.1} parent=43 // pred_fallthru
        _
    $region44: #{embed_forward.1} parent=5 // pred_fallthru
      _
  $region6: #{embed_forward.1} parent=0 // loop_footer
    %s14 = sadd.s32 1, %s10
  $region7: #{embed_forward.1} parent=0 // loop_footer_branch
    %9 = sbr.rel target = $region3
  $region8: #{embed_forward.1} parent=0 // loop_exit
    _

</llo_original>
